<compile_context>
chip_gen: v7x
topology: tpu7x:2x2x1
jax: 0.10.0
libtpu: 0.0.40
codegen_flags: <defaults>
</compile_context>

<pallas_src>
import numpy as np
import jax
import jax.numpy as jnp
from jax import lax
from jax.experimental import pallas as pl
from jax.experimental.pallas import tpu as pltpu

WLEN = 128               # n_fft / window length (module default)
WSTEP = 64               # hop length (module default)
NFREQ = WLEN // 2 + 1    # 65 retained cepstral rows
# TODO(synk): only mode='linear' (default) and p=2 (default) are implemented; the
#             mode='mel' MFCC branch and general-p cdist are not translated.


# -------------------- trace-time constant: hann-windowed DFT matrix --------------------------
def _windowed_dft():
    """(2*WLEN, WLEN): rows 0:128 = (hann*cos) DFT, rows 128:256 = (hann*sin) DFT."""
    n = WLEN
    i = np.arange(n)
    win = 0.5 - 0.5 * np.cos(2.0 * np.pi * i / n)           # torch.hann_window (periodic)
    ang = 2.0 * np.pi * np.outer(np.arange(n), np.arange(n)) / n
    cosm = np.cos(ang) * win[None, :]
    sinm = np.sin(ang) * win[None, :]
    return np.concatenate([cosm, sinm], axis=0).astype(np.float32)


# ------------------------------- fused Pallas kernel -----------------------------------------
def _make_kernel(batch, nframes):
    # real(ifft over batch dim, norm='backward'): w[b_out, b_in] = cos(2*pi*b_out*b_in/B) / B
    wmix = [[float(np.cos(2.0 * np.pi * bo * bi / batch) / batch) for bi in range(batch)]
            for bo in range(batch)]

    def kernel(fr_ref, dft_ref, out_ref):
        # fr_ref : (WLEN, 2*B*F)   frame columns, col = sig*(B*F) + b*F + f (sig 0=pred, 1=tgt)
        # dft_ref: (2*WLEN, WLEN)  [hann*cos ; hann*sin] (window folded in at trace time)
        # out_ref: (B, NFREQ, WLEN) lane-dense distances (cols >= NFREQ are junk, sliced off)

        # One MXU dot for all frames of both signals: [re ; im] = dftw @ frames
        ri = jnp.dot(dft_ref[...], fr_ref[...], preferred_element_type=jnp.float32)
        re = ri[:WLEN, :]
        im = ri[WLEN:, :]
        xl = jnp.log(re * re + im * im)                 # (WLEN, 2*B*F) log power spectrogram

        def block(sig, b):                              # contiguous lane slice of one (sig, b)
            start = (sig * batch + b) * nframes
            return xl[:, start:start + nframes]         # (WLEN, F)

        def mixed(sig, bo):                             # real(ifft over batch) cosine butterfly
            acc = wmix[bo][0] * block(sig, 0)
            for bi in range(1, batch):
                acc = acc + wmix[bo][bi] * block(sig, bi)
            return acc                                  # (WLEN, F)

        for b in range(batch):                          # static unroll (B is small)
            cp = mixed(0, b)[:NFREQ, :]                 # (65, F)   predictions cepstra
            ct = mixed(1, b)                            # (128, F)  targets: 128 rows -> lane-dense out
            xn = jnp.sum(cp * cp, axis=-1, keepdims=True)                    # (65, 1)
            yn = jnp.transpose(jnp.sum(ct * ct, axis=-1, keepdims=True))     # (1, 128)
            xy = lax.dot_general(cp, ct, (((1,), (1,)), ((), ())),
                                 preferred_element_type=jnp.float32)         # (65, 128)
            d2 = jnp.maximum(xn + yn - 2.0 * xy, 0.0)
            out_ref[b] = jnp.sqrt(d2)                   # cols [:65] == torch.cdist; rest junk

    return kernel


def _build_call(batch, nframes):
    ncols = 2 * batch * nframes
    flops = (2 * (2 * WLEN) * WLEN * ncols              # windowed DFT matmul
             + batch * 2 * NFREQ * nframes * WLEN       # cdist cross-term dots
             + 4 * batch * batch * WLEN * nframes)      # batch-dim cosine mixing
    transcendentals = WLEN * ncols + batch * NFREQ * WLEN   # log + sqrt
    bytes_accessed = 4 * (WLEN * ncols + 2 * WLEN * WLEN + batch * NFREQ * WLEN)
    return pl.pallas_call(
        _make_kernel(batch, nframes),
        out_shape=jax.ShapeDtypeStruct((batch, NFREQ, WLEN), jnp.float32),
        grid=(1,),
        in_specs=[
            pl.BlockSpec((WLEN, ncols), lambda i: (0, 0)),
            pl.BlockSpec((2 * WLEN, WLEN), lambda i: (0, 0)),
        ],
        out_specs=pl.BlockSpec((batch, NFREQ, WLEN), lambda i: (0, 0, 0)),
        compiler_params=pltpu.CompilerParams(dimension_semantics=("arbitrary",)),
        cost_estimate=pl.CostEstimate(flops=flops, transcendentals=transcendentals,
                                      bytes_accessed=bytes_accessed),
        # TODO(synk): for long signals (large F) tile the frame axis with a real grid and
        #             accumulate the cdist Gram terms across an "arbitrary" axis, sizing
        #             tiles for v7x's 64 MiB VMEM; at B=2, T=512 one fused step minimizes
        #             the dominant launch/glue overhead.
        # TODO(synk): grid=(1,) runs on a single TensorCore; on v7x the second TC stays idle.
        #             A 2-way "parallel" split over batch would duplicate the (tiny) shared
        #             cep work here, so it is only worth it for larger problem sizes.
    )


# ------------------------------------ wrapper -------------------------------------------------
@jax.jit
def cepdist_forward(predictions, targets):
    batch, siglen = predictions.shape
    nframes = 1 + siglen // WSTEP          # torchaudio center=True frame count
    pad = WLEN // 2

    def frame_cols(x):
        # reflect pad (center=True) + hop-strided windows; columns batch-major (col = b*F + f)
        xp = jnp.pad(x, ((0, 0), (pad, pad)), mode="reflect")                    # (B, T+WLEN)
        idx = jnp.arange(nframes)[:, None] * WSTEP + jnp.arange(WLEN)[None, :]   # (F, WLEN)
        fr = xp[:, idx]                                                          # (B, F, WLEN)
        return fr.reshape(batch * nframes, WLEN).T                               # (WLEN, B*F)

    frames = jnp.concatenate([frame_cols(predictions), frame_cols(targets)], axis=1)
    dftw = jnp.asarray(_windowed_dft())

    d = _build_call(batch, nframes)(frames, dftw)
    return d[:, :, :NFREQ]                                                       # (B, 65, 65)


# ------------------------------- pure-JAX reference -------------------------------------------
def cepdist_reference(predictions, targets):
    i = np.arange(WLEN)
    window = jnp.asarray((0.5 - 0.5 * np.cos(2.0 * np.pi * i / WLEN)).astype(np.float32))
    pad = WLEN // 2

    def frame(x):
        xp = jnp.pad(x, ((0, 0), (pad, pad)), mode="reflect")
        nf = 1 + (xp.shape[1] - WLEN) // WSTEP
        idx = jnp.arange(nf)[:, None] * WSTEP + jnp.arange(WLEN)[None, :]
        return xp[:, idx]                              # (B, F, WLEN)

    def cep(x):
        frames = frame(x) * window[None, None, :]
        xf = jnp.fft.fft(frames, axis=-1)
        xl = jnp.log(jnp.abs(xf) ** 2)
        cx = jnp.real(jnp.fft.ifft(xl, axis=0))        # ifft over the batch dim (module quirk)
        cx = cx[:, :, :NFREQ]
        return jnp.transpose(cx, (0, 2, 1))            # (B, 65, F)

    cp, ct = cep(predictions), cep(targets)
    diff = cp[:, :, None, :] - ct[:, None, :, :]
    return jnp.sqrt(jnp.sum(diff * diff, axis=-1))


if __name__ == "__main__":
    key = jax.random.PRNGKey(0)
    kp, kt = jax.random.split(key)
    B, T = 2, 512
    predictions = jax.random.normal(kp, (B, T), dtype=jnp.float32)
    targets = jax.random.normal(kt, (B, T), dtype=jnp.float32)

    out = jax.block_until_ready(cepdist_forward(predictions, targets))  # (B, 65, 65)
    ref = cepdist_reference(predictions, targets)

    assert out.shape == (B, NFREQ, NFREQ)
    assert np.allclose(np.asarray(out), np.asarray(ref), rtol=5e-2, atol=5e-2), \
        "mismatch vs pure-JAX reference"
    print("KERNEL_OK")
</pallas_src>

<mosaic_0001>
module attributes {stable_mosaic.version = 11 : i64} {
  func.func private @main(%arg0: i32) attributes {dimension_semantics = [#tpu.dimension_semantics<core_parallel>], iteration_bounds = array<i64: 2>, tpu.core_type = #tpu.core_type<sc_scalar_subcore>, window_params = []} {
    return
  }
}

module attributes {stable_mosaic.version = 11 : i64} {
  func.func private @main(%arg0: i32) attributes {dimension_semantics = [#tpu.dimension_semantics<core_parallel>], iteration_bounds = array<i64: 2>, tpu.core_type = #tpu.core_type<sc_scalar_subcore>, window_params = []} {
    return
  }
}

module attributes {stable_mosaic.version = 11 : i64} {
  func.func @kernel(%arg0: i32, %arg1: memref<128x36xf32, #tpu.memory_space<vmem>>, %arg2: memref<256x128xf32, #tpu.memory_space<vmem>>, %arg3: memref<2x65x128xf32, #tpu.memory_space<vmem>>) attributes {dimension_semantics = [#tpu.dimension_semantics<arbitrary>], iteration_bounds = array<i64: 1>, scalar_prefetch = 0 : i64, scratch_operands = 0 : i64, tpu.core_type = #tpu.core_type<tc>, window_params = [{pipeline_mode = #tpu.pipeline_mode<synchronous>, transform_indices = @transform_0, window_bounds = array<i64: 128, 36>}, {pipeline_mode = #tpu.pipeline_mode<synchronous>, transform_indices = @transform_1, window_bounds = array<i64: 256, 128>}, {pipeline_mode = #tpu.pipeline_mode<synchronous>, transform_indices = @transform_2, window_bounds = array<i64: 2, 65, 128>}]} {
    %c0 = arith.constant 0 : index
    %c0_0 = arith.constant 0 : index
    %0 = vector.load %arg2[%c0, %c0_0] : memref<256x128xf32, #tpu.memory_space<vmem>>, vector<256x128xf32>
    %c0_1 = arith.constant 0 : index
    %c0_2 = arith.constant 0 : index
    %1 = vector.load %arg1[%c0_1, %c0_2] : memref<128x36xf32, #tpu.memory_space<vmem>>, vector<128x36xf32>
    %cst = arith.constant dense<0.000000e+00> : vector<256x36xf32>
    %2 = tpu.matmul %0, %1, %cst {dimension_numbers = #tpu.dot_dimension_numbers<[1], [0], [0], [1], [0, 0, 1, 1], [], []>} : vector<256x128xf32>, vector<128x36xf32>, vector<256x36xf32> -> vector<256x36xf32>
    %3 = vector.extract_strided_slice %2 {offsets = [0, 0], sizes = [128, 36], strides = [1, 1]} : vector<256x36xf32> to vector<128x36xf32>
    %4 = vector.extract_strided_slice %2 {offsets = [128, 0], sizes = [128, 36], strides = [1, 1]} : vector<256x36xf32> to vector<128x36xf32>
    %5 = arith.mulf %3, %3 : vector<128x36xf32>
    %6 = arith.mulf %4, %4 : vector<128x36xf32>
    %7 = arith.addf %5, %6 : vector<128x36xf32>
    %8 = math.log %7 : vector<128x36xf32>
    %9 = vector.extract_strided_slice %8 {offsets = [0, 0], sizes = [128, 9], strides = [1, 1]} : vector<128x36xf32> to vector<128x9xf32>
    %cst_3 = arith.constant 5.000000e-01 : f32
    %10 = vector.broadcast %cst_3 : f32 to vector<128x9xf32>
    %11 = arith.mulf %10, %9 : vector<128x9xf32>
    %12 = vector.extract_strided_slice %8 {offsets = [0, 9], sizes = [128, 9], strides = [1, 1]} : vector<128x36xf32> to vector<128x9xf32>
    %cst_4 = arith.constant 5.000000e-01 : f32
    %13 = vector.broadcast %cst_4 : f32 to vector<128x9xf32>
    %14 = arith.mulf %13, %12 : vector<128x9xf32>
    %15 = arith.addf %11, %14 : vector<128x9xf32>
    %16 = vector.extract_strided_slice %15 {offsets = [0, 0], sizes = [65, 9], strides = [1, 1]} : vector<128x9xf32> to vector<65x9xf32>
    %17 = vector.extract_strided_slice %8 {offsets = [0, 18], sizes = [128, 9], strides = [1, 1]} : vector<128x36xf32> to vector<128x9xf32>
    %cst_5 = arith.constant 5.000000e-01 : f32
    %18 = vector.broadcast %cst_5 : f32 to vector<128x9xf32>
    %19 = arith.mulf %18, %17 : vector<128x9xf32>
    %20 = vector.extract_strided_slice %8 {offsets = [0, 27], sizes = [128, 9], strides = [1, 1]} : vector<128x36xf32> to vector<128x9xf32>
    %cst_6 = arith.constant 5.000000e-01 : f32
    %21 = vector.broadcast %cst_6 : f32 to vector<128x9xf32>
    %22 = arith.mulf %21, %20 : vector<128x9xf32>
    %23 = arith.addf %19, %22 : vector<128x9xf32>
    %24 = arith.mulf %16, %16 : vector<65x9xf32>
    %cst_7 = arith.constant dense<0.000000e+00> : vector<65xf32>
    %25 = vector.multi_reduction <add>, %24, %cst_7 [1] : vector<65x9xf32> to vector<65xf32>
    %26 = vector.shape_cast %25 : vector<65xf32> to vector<65x1xf32>
    %27 = arith.mulf %23, %23 : vector<128x9xf32>
    %cst_8 = arith.constant dense<0.000000e+00> : vector<128xf32>
    %28 = vector.multi_reduction <add>, %27, %cst_8 [1] : vector<128x9xf32> to vector<128xf32>
    %29 = vector.shape_cast %28 : vector<128xf32> to vector<128x1xf32>
    %30 = tpu.transpose %29, [1, 0] : vector<128x1xf32> -> vector<1x128xf32>
    %cst_9 = arith.constant dense<0.000000e+00> : vector<65x128xf32>
    %31 = tpu.matmul %16, %23, %cst_9 {dimension_numbers = #tpu.dot_dimension_numbers<[1], [1], [0], [0], [0, 0, 1, 0], [], []>} : vector<65x9xf32>, vector<128x9xf32>, vector<65x128xf32> -> vector<65x128xf32>
    %32 = vector.broadcast %26 : vector<65x1xf32> to vector<65x128xf32>
    %33 = vector.broadcast %30 : vector<1x128xf32> to vector<65x128xf32>
    %34 = arith.addf %32, %33 : vector<65x128xf32>
    %cst_10 = arith.constant 2.000000e+00 : f32
    %35 = vector.broadcast %cst_10 : f32 to vector<65x128xf32>
    %36 = arith.mulf %35, %31 : vector<65x128xf32>
    %37 = arith.subf %34, %36 : vector<65x128xf32>
    %cst_11 = arith.constant 0.000000e+00 : f32
    %38 = vector.broadcast %cst_11 : f32 to vector<65x128xf32>
    %39 = arith.maximumf %37, %38 : vector<65x128xf32>
    %40 = math.sqrt %39 : vector<65x128xf32>
    %c0_12 = arith.constant 0 : index
    %c0_13 = arith.constant 0 : index
    %c0_14 = arith.constant 0 : index
    %41 = vector.load %arg3[%c0_12, %c0_13, %c0_14] : memref<2x65x128xf32, #tpu.memory_space<vmem>>, vector<1x65x128xf32>
    %42 = vector.shape_cast %41 : vector<1x65x128xf32> to vector<65x128xf32>
    %43 = vector.shape_cast %40 : vector<65x128xf32> to vector<1x65x128xf32>
    tpu.vector_store %arg3[%c0_12, %c0_13, %c0_14], %43 {strides = array<i32>} : memref<2x65x128xf32, #tpu.memory_space<vmem>>, vector<1x65x128xf32>,
    %44 = vector.extract_strided_slice %8 {offsets = [0, 0], sizes = [128, 9], strides = [1, 1]} : vector<128x36xf32> to vector<128x9xf32>
    %cst_15 = arith.constant 5.000000e-01 : f32
    %45 = vector.broadcast %cst_15 : f32 to vector<128x9xf32>
    %46 = arith.mulf %45, %44 : vector<128x9xf32>
    %47 = vector.extract_strided_slice %8 {offsets = [0, 9], sizes = [128, 9], strides = [1, 1]} : vector<128x36xf32> to vector<128x9xf32>
    %cst_16 = arith.constant -5.000000e-01 : f32
    %48 = vector.broadcast %cst_16 : f32 to vector<128x9xf32>
    %49 = arith.mulf %48, %47 : vector<128x9xf32>
    %50 = arith.addf %46, %49 : vector<128x9xf32>
    %51 = vector.extract_strided_slice %50 {offsets = [0, 0], sizes = [65, 9], strides = [1, 1]} : vector<128x9xf32> to vector<65x9xf32>
    %52 = vector.extract_strided_slice %8 {offsets = [0, 18], sizes = [128, 9], strides = [1, 1]} : vector<128x36xf32> to vector<128x9xf32>
    %cst_17 = arith.constant 5.000000e-01 : f32
    %53 = vector.broadcast %cst_17 : f32 to vector<128x9xf32>
    %54 = arith.mulf %53, %52 : vector<128x9xf32>
    %55 = vector.extract_strided_slice %8 {offsets = [0, 27], sizes = [128, 9], strides = [1, 1]} : vector<128x36xf32> to vector<128x9xf32>
    %cst_18 = arith.constant -5.000000e-01 : f32
    %56 = vector.broadcast %cst_18 : f32 to vector<128x9xf32>
    %57 = arith.mulf %56, %55 : vector<128x9xf32>
    %58 = arith.addf %54, %57 : vector<128x9xf32>
    %59 = arith.mulf %51, %51 : vector<65x9xf32>
    %cst_19 = arith.constant dense<0.000000e+00> : vector<65xf32>
    %60 = vector.multi_reduction <add>, %59, %cst_19 [1] : vector<65x9xf32> to vector<65xf32>
    %61 = vector.shape_cast %60 : vector<65xf32> to vector<65x1xf32>
    %62 = arith.mulf %58, %58 : vector<128x9xf32>
    %cst_20 = arith.constant dense<0.000000e+00> : vector<128xf32>
    %63 = vector.multi_reduction <add>, %62, %cst_20 [1] : vector<128x9xf32> to vector<128xf32>
    %64 = vector.shape_cast %63 : vector<128xf32> to vector<128x1xf32>
    %65 = tpu.transpose %64, [1, 0] : vector<128x1xf32> -> vector<1x128xf32>
    %cst_21 = arith.constant dense<0.000000e+00> : vector<65x128xf32>
    %66 = tpu.matmul %51, %58, %cst_21 {dimension_numbers = #tpu.dot_dimension_numbers<[1], [1], [0], [0], [0, 0, 1, 0], [], []>} : vector<65x9xf32>, vector<128x9xf32>, vector<65x128xf32> -> vector<65x128xf32>
    %67 = vector.broadcast %61 : vector<65x1xf32> to vector<65x128xf32>
    %68 = vector.broadcast %65 : vector<1x128xf32> to vector<65x128xf32>
    %69 = arith.addf %67, %68 : vector<65x128xf32>
    %cst_22 = arith.constant 2.000000e+00 : f32
    %70 = vector.broadcast %cst_22 : f32 to vector<65x128xf32>
    %71 = arith.mulf %70, %66 : vector<65x128xf32>
    %72 = arith.subf %69, %71 : vector<65x128xf32>
    %cst_23 = arith.constant 0.000000e+00 : f32
    %73 = vector.broadcast %cst_23 : f32 to vector<65x128xf32>
    %74 = arith.maximumf %72, %73 : vector<65x128xf32>
    %75 = math.sqrt %74 : vector<65x128xf32>
    %c1 = arith.constant 1 : index
    %c0_24 = arith.constant 0 : index
    %c0_25 = arith.constant 0 : index
    %76 = vector.load %arg3[%c1, %c0_24, %c0_25] : memref<2x65x128xf32, #tpu.memory_space<vmem>>, vector<1x65x128xf32>
    %77 = vector.shape_cast %76 : vector<1x65x128xf32> to vector<65x128xf32>
    %78 = vector.shape_cast %75 : vector<65x128xf32> to vector<1x65x128xf32>
    tpu.vector_store %arg3[%c1, %c0_24, %c0_25], %78 {strides = array<i32>} : memref<2x65x128xf32, #tpu.memory_space<vmem>>, vector<1x65x128xf32>,
    return
  }
  func.func @transform_0(%arg0: i32) -> (i32, i32) {
    %c0_i32 = arith.constant 0 : i32
    %c0_i32_0 = arith.constant 0 : i32
    %c0_i32_1 = arith.constant 0 : i32
    return %c0_i32, %c0_i32_0 : i32, i32
  }
  func.func @transform_1(%arg0: i32) -> (i32, i32) {
    %c0_i32 = arith.constant 0 : i32
    %c0_i32_0 = arith.constant 0 : i32
    %c0_i32_1 = arith.constant 0 : i32
    return %c0_i32, %c0_i32_0 : i32, i32
  }
  func.func @transform_2(%arg0: i32) -> (i32, i32, i32) {
    %c0_i32 = arith.constant 0 : i32
    %c0_i32_0 = arith.constant 0 : i32
    %c0_i32_1 = arith.constant 0 : i32
    %c0_i32_2 = arith.constant 0 : i32
    return %c0_i32, %c0_i32_0, %c0_i32_1 : i32, i32, i32
  }
}

</mosaic_0001>

<llo_original>
// kernel: cepdist_forward.1
$region0: #{cepdist_forward.1}
  #allocation0 [shape = 'u32[]', space=smem, size = 0x4, offset = 0x4, fixed_abs, tag = 'smem constant byte address 0x4 - core index']
  #allocation1 [shape = 'u32[144,128]{1,0:T(1,128)}', space=vmem, size = 0x12000, scoped, tag = 'internal scratch']
  %s0 = inlined_call_operand.vmem [shape: f32[128,36], index: 0, kind: input, shape index: {}]
  %s1 = inlined_call_operand.vmem [shape: f32[256,128], index: 1, kind: input, shape index: {}]
  %s2 = inlined_call_operand.vmem [shape: f32[2,65,128], index: 2, kind: output, shape index: {}]
  %s3 = sld [smem:[#allocation0]]
  $region18: #{cepdist_forward.1} parent=0
    _
  %s5 = ssub.s32 1, %s3
  %s6 = scalar_select 0, %s5, %s3
  // Predicated region
  $region2: #{cepdist_forward.1} parent=0 // pred_check
    _
  $region3: #{cepdist_forward.1} parent=0 // pred_check_branch
    %8 = sbr.rel (0) target = $region5
  $region4: #{cepdist_forward.1} parent=0 // pred_region
    _
  $region5: #{cepdist_forward.1} parent=0 // pred_fallthru
    _
  // Predicated region
  $region6: #{cepdist_forward.1} parent=0 // pred_check
    _
  $region7: #{cepdist_forward.1} parent=0 // pred_check_branch
    %10 = sbr.rel (0) target = $region9
  $region8: #{cepdist_forward.1} parent=0 // pred_region
    _
  $region9: #{cepdist_forward.1} parent=0 // pred_fallthru
    _
  %v11 = vld [vmem:[%s1] sm:$0xff]
  %v12 = vld [vmem:[%s1 + $0x8] sm:$0xff]
  %v13 = vld [vmem:[%s1 + $0x10] sm:$0xff]
  %v14 = vld [vmem:[%s1 + $0x18] sm:$0xff]
  %v15 = vld [vmem:[%s1 + $0x20] sm:$0xff]
  %v16 = vld [vmem:[%s1 + $0x28] sm:$0xff]
  %v17 = vld [vmem:[%s1 + $0x30] sm:$0xff]
  %v18 = vld [vmem:[%s1 + $0x38] sm:$0xff]
  %v19 = vld [vmem:[%s1 + $0x40] sm:$0xff]
  %v20 = vld [vmem:[%s1 + $0x48] sm:$0xff]
  %v21 = vld [vmem:[%s1 + $0x50] sm:$0xff]
  %v22 = vld [vmem:[%s1 + $0x58] sm:$0xff]
  %v23 = vld [vmem:[%s1 + $0x60] sm:$0xff]
  %v24 = vld [vmem:[%s1 + $0x68] sm:$0xff]
  %v25 = vld [vmem:[%s1 + $0x70] sm:$0xff]
  %v26 = vld [vmem:[%s1 + $0x78] sm:$0xff]
  %v27 = vld [vmem:[%s1 + $0x80] sm:$0xff]
  %v28 = vld [vmem:[%s1 + $0x88] sm:$0xff]
  %v29 = vld [vmem:[%s1 + $0x90] sm:$0xff]
  %v30 = vld [vmem:[%s1 + $0x98] sm:$0xff]
  %v31 = vld [vmem:[%s1 + $0xa0] sm:$0xff]
  %v32 = vld [vmem:[%s1 + $0xa8] sm:$0xff]
  %v33 = vld [vmem:[%s1 + $0xb0] sm:$0xff]
  %v34 = vld [vmem:[%s1 + $0xb8] sm:$0xff]
  %v35 = vld [vmem:[%s1 + $0xc0] sm:$0xff]
  %v36 = vld [vmem:[%s1 + $0xc8] sm:$0xff]
  %v37 = vld [vmem:[%s1 + $0xd0] sm:$0xff]
  %v38 = vld [vmem:[%s1 + $0xd8] sm:$0xff]
  %v39 = vld [vmem:[%s1 + $0xe0] sm:$0xff]
  %v40 = vld [vmem:[%s1 + $0xe8] sm:$0xff]
  %v41 = vld [vmem:[%s1 + $0xf0] sm:$0xff]
  %v42 = vld [vmem:[%s1 + $0xf8] sm:$0xff]
  %v43 = vld [vmem:[%s0] sm:$0xff]
  %v44 = vld [vmem:[%s0 + $0x8] sm:$0xff]
  %v45 = vld [vmem:[%s0 + $0x10] sm:$0xff]
  %v46 = vld [vmem:[%s0 + $0x18] sm:$0xff]
  %v47 = vld [vmem:[%s0 + $0x20] sm:$0xff]
  %v48 = vld [vmem:[%s0 + $0x28] sm:$0xff]
  %v49 = vld [vmem:[%s0 + $0x30] sm:$0xff]
  %v50 = vld [vmem:[%s0 + $0x38] sm:$0xff]
  %v51 = vld [vmem:[%s0 + $0x40] sm:$0xff]
  %v52 = vld [vmem:[%s0 + $0x48] sm:$0xff]
  %v53 = vld [vmem:[%s0 + $0x50] sm:$0xff]
  %v54 = vld [vmem:[%s0 + $0x58] sm:$0xff]
  %v55 = vld [vmem:[%s0 + $0x60] sm:$0xff]
  %v56 = vld [vmem:[%s0 + $0x68] sm:$0xff]
  %v57 = vld [vmem:[%s0 + $0x70] sm:$0xff]
  %v58 = vld [vmem:[%s0 + $0x78] sm:$0xff]
  %59 = vmatprep.subr.mxu0 0.0
  %60 = vmatpush1.msra.mxu0 %v43
  %61 = vmatprep.subr.mxu0 0.0
  %62 = vmatpush1.msra.mxu0 %v44
  %63 = vmatprep.subr.mxu0 0.0
  %64 = vmatpush1.msra.mxu0 %v45
  %65 = vmatprep.subr.mxu0 0.0
  %66 = vmatpush1.msra.mxu0 %v46
  %67 = vmatprep.subr.mxu0 0.0
  %68 = vmatpush1.msra.mxu0 %v47
  %69 = vmatprep.subr.mxu0 0.0
  %70 = vmatpush1.msra.mxu0 %v48
  %71 = vmatprep.subr.mxu0 0.0
  %72 = vmatpush1.msra.mxu0 %v49
  %73 = vmatprep.subr.mxu0 0.0
  %74 = vmatpush1.msra.mxu0 %v50
  %75 = vmatprep.subr.mxu0 0.0
  %76 = vmatpush1.msra.mxu0 %v51
  %77 = vmatprep.subr.mxu0 0.0
  %78 = vmatpush1.msra.mxu0 %v52
  %79 = vmatprep.subr.mxu0 0.0
  %80 = vmatpush1.msra.mxu0 %v53
  %81 = vmatprep.subr.mxu0 0.0
  %82 = vmatpush1.msra.mxu0 %v54
  %83 = vmatprep.subr.mxu0 0.0
  %84 = vmatpush1.msra.mxu0 %v55
  %85 = vmatprep.subr.mxu0 0.0
  %86 = vmatpush1.msra.mxu0 %v56
  %87 = vmatprep.subr.mxu0 0.0
  %88 = vmatpush1.msra.mxu0 %v57
  %89 = vmatprep.subr.mxu0 0.0
  %90 = vmatpush1.msra.mxu0 %v58
  %91 = vmatprep.subr.mxu0 0.0
  %92 = vmatpush1.msra.mxu0 0.0
  %93 = vmatprep.subr.mxu0 0.0
  %94 = vmatpush1.msra.mxu0 0.0
  %95 = vmatprep.subr.mxu0 0.0
  %96 = vmatpush1.msra.mxu0 0.0
  %97 = vmatprep.subr.mxu0 0.0
  %98 = vmatpush1.msra.mxu0 0.0
  %99 = vmatprep.subr.mxu0 0.0
  %100 = vmatpush1.msra.mxu0 0.0
  %101 = vmatprep.subr.mxu0 0.0
  %102 = vmatpush1.msra.mxu0 0.0
  %103 = vmatprep.subr.mxu0 0.0
  %104 = vmatpush1.msra.mxu0 0.0
  %105 = vmatprep.subr.mxu0 0.0
  %106 = vmatpush1.msra.mxu0 0.0
  %107 = vmatprep.subr.mxu0 0.0
  %108 = vmatpush1.msra.mxu0 0.0
  %109 = vmatprep.subr.mxu0 0.0
  %110 = vmatpush1.msra.mxu0 0.0
  %111 = vmatprep.subr.mxu0 0.0
  %112 = vmatpush1.msra.mxu0 0.0
  %113 = vmatprep.subr.mxu0 0.0
  %114 = vmatpush1.msra.mxu0 0.0
  %115 = vmatprep.subr.mxu0 0.0
  %116 = vmatpush1.msra.mxu0 0.0
  %117 = vmatprep.subr.mxu0 0.0
  %118 = vmatpush1.msra.mxu0 0.0
  %119 = vmatprep.subr.mxu0 0.0
  %120 = vmatpush1.msra.mxu0 0.0
  %121 = vmatprep.subr.mxu0 0.0
  %122 = vmatpush1.msra.mxu0 0.0
  %123 = vmatprep.mubr.f32.mxu0 0.0
  %124 = vmatmul.mubr.f32.gmra.mrb[0].mxu0 %v11
  %v125 = vpop.f32.mrb[0].mxu0
  %v126 = vadd.f32 0.0, %v125
  %v127 = vpop.f32.mrb[0].mxu0
  %128 = vmatprep.mubr.f32.mxu0 0.0
  %129 = vmatmul.mubr.f32.gmra.mrb[0].mxu0 %v12
  %v130 = vpop.f32.mrb[0].mxu0
  %v131 = vadd.f32 0.0, %v130
  %v132 = vpop.f32.mrb[0].mxu0
  %133 = vmatprep.mubr.f32.mxu0 0.0
  %134 = vmatmul.mubr.f32.gmra.mrb[0].mxu0 %v13
  %v135 = vpop.f32.mrb[0].mxu0
  %v136 = vadd.f32 0.0, %v135
  %v137 = vpop.f32.mrb[0].mxu0
  %138 = vmatprep.mubr.f32.mxu0 0.0
  %139 = vmatmul.mubr.f32.gmra.mrb[0].mxu0 %v14
  %v140 = vpop.f32.mrb[0].mxu0
  %v141 = vadd.f32 0.0, %v140
  %v142 = vpop.f32.mrb[0].mxu0
  %143 = vmatprep.mubr.f32.mxu0 0.0
  %144 = vmatmul.mubr.f32.gmra.mrb[0].mxu0 %v15
  %v145 = vpop.f32.mrb[0].mxu0
  %v146 = vadd.f32 0.0, %v145
  %v147 = vpop.f32.mrb[0].mxu0
  %148 = vmatprep.mubr.f32.mxu0 0.0
  %149 = vmatmul.mubr.f32.gmra.mrb[0].mxu0 %v16
  %v150 = vpop.f32.mrb[0].mxu0
  %v151 = vadd.f32 0.0, %v150
  %v152 = vpop.f32.mrb[0].mxu0
  %153 = vmatprep.mubr.f32.mxu0 0.0
  %154 = vmatmul.mubr.f32.gmra.mrb[0].mxu0 %v17
  %v155 = vpop.f32.mrb[0].mxu0
  %v156 = vadd.f32 0.0, %v155
  %v157 = vpop.f32.mrb[0].mxu0
  %158 = vmatprep.mubr.f32.mxu0 0.0
  %159 = vmatmul.mubr.f32.gmra.mrb[0].mxu0 %v18
  %v160 = vpop.f32.mrb[0].mxu0
  %v161 = vadd.f32 0.0, %v160
  %v162 = vpop.f32.mrb[0].mxu0
  %163 = vmatprep.mubr.f32.mxu0 0.0
  %164 = vmatmul.mubr.f32.gmra.mrb[0].mxu0 %v19
  %v165 = vpop.f32.mrb[0].mxu0
  %v166 = vadd.f32 0.0, %v165
  %v167 = vpop.f32.mrb[0].mxu0
  %168 = vmatprep.mubr.f32.mxu0 0.0
  %169 = vmatmul.mubr.f32.gmra.mrb[0].mxu0 %v20
  %v170 = vpop.f32.mrb[0].mxu0
  %v171 = vadd.f32 0.0, %v170
  %v172 = vpop.f32.mrb[0].mxu0
  %173 = vmatprep.mubr.f32.mxu0 0.0
  %174 = vmatmul.mubr.f32.gmra.mrb[0].mxu0 %v21
  %v175 = vpop.f32.mrb[0].mxu0
  %v176 = vadd.f32 0.0, %v175
  %v177 = vpop.f32.mrb[0].mxu0
  %178 = vmatprep.mubr.f32.mxu0 0.0
  %179 = vmatmul.mubr.f32.gmra.mrb[0].mxu0 %v22
  %v180 = vpop.f32.mrb[0].mxu0
  %v181 = vadd.f32 0.0, %v180
  %v182 = vpop.f32.mrb[0].mxu0
  %183 = vmatprep.mubr.f32.mxu0 0.0
  %184 = vmatmul.mubr.f32.gmra.mrb[0].mxu0 %v23
  %v185 = vpop.f32.mrb[0].mxu0
  %v186 = vadd.f32 0.0, %v185
  %v187 = vpop.f32.mrb[0].mxu0
  %188 = vmatprep.mubr.f32.mxu0 0.0
  %189 = vmatmul.mubr.f32.gmra.mrb[0].mxu0 %v24
  %v190 = vpop.f32.mrb[0].mxu0
  %v191 = vadd.f32 0.0, %v190
  %v192 = vpop.f32.mrb[0].mxu0
  %193 = vmatprep.mubr.f32.mxu0 0.0
  %194 = vmatmul.mubr.f32.gmra.mrb[0].mxu0 %v25
  %v195 = vpop.f32.mrb[0].mxu0
  %v196 = vadd.f32 0.0, %v195
  %v197 = vpop.f32.mrb[0].mxu0
  %198 = vmatprep.mubr.f32.mxu0 0.0
  %199 = vmatmul.mubr.f32.gmra.mrb[0].mxu0 %v26
  %v200 = vpop.f32.mrb[0].mxu0
  %v201 = vadd.f32 0.0, %v200
  %v202 = vpop.f32.mrb[0].mxu0
  %203 = vmatprep.mubr.f32.mxu0 0.0
  %204 = vmatmul.mubr.f32.gmra.mrb[0].mxu0 %v27
  %v205 = vpop.f32.mrb[0].mxu0
  %v206 = vadd.f32 0.0, %v205
  %v207 = vpop.f32.mrb[0].mxu0
  %208 = vmatprep.mubr.f32.mxu0 0.0
  %209 = vmatmul.mubr.f32.gmra.mrb[0].mxu0 %v28
  %v210 = vpop.f32.mrb[0].mxu0
  %v211 = vadd.f32 0.0, %v210
  %v212 = vpop.f32.mrb[0].mxu0
  %213 = vmatprep.mubr.f32.mxu0 0.0
  %214 = vmatmul.mubr.f32.gmra.mrb[0].mxu0 %v29
  %v215 = vpop.f32.mrb[0].mxu0
  %v216 = vadd.f32 0.0, %v215
  %v217 = vpop.f32.mrb[0].mxu0
  %218 = vmatprep.mubr.f32.mxu0 0.0
  %219 = vmatmul.mubr.f32.gmra.mrb[0].mxu0 %v30
  %v220 = vpop.f32.mrb[0].mxu0
  %v221 = vadd.f32 0.0, %v220
  %v222 = vpop.f32.mrb[0].mxu0
  %223 = vmatprep.mubr.f32.mxu0 0.0
  %224 = vmatmul.mubr.f32.gmra.mrb[0].mxu0 %v31
  %v225 = vpop.f32.mrb[0].mxu0
  %v226 = vadd.f32 0.0, %v225
  %v227 = vpop.f32.mrb[0].mxu0
  %228 = vmatprep.mubr.f32.mxu0 0.0
  %229 = vmatmul.mubr.f32.gmra.mrb[0].mxu0 %v32
  %v230 = vpop.f32.mrb[0].mxu0
  %v231 = vadd.f32 0.0, %v230
  %v232 = vpop.f32.mrb[0].mxu0
  %233 = vmatprep.mubr.f32.mxu0 0.0
  %234 = vmatmul.mubr.f32.gmra.mrb[0].mxu0 %v33
  %v235 = vpop.f32.mrb[0].mxu0
  %v236 = vadd.f32 0.0, %v235
  %v237 = vpop.f32.mrb[0].mxu0
  %238 = vmatprep.mubr.f32.mxu0 0.0
  %239 = vmatmul.mubr.f32.gmra.mrb[0].mxu0 %v34
  %v240 = vpop.f32.mrb[0].mxu0
  %v241 = vadd.f32 0.0, %v240
  %v242 = vpop.f32.mrb[0].mxu0
  %243 = vmatprep.mubr.f32.mxu0 0.0
  %244 = vmatmul.mubr.f32.gmra.mrb[0].mxu0 %v35
  %v245 = vpop.f32.mrb[0].mxu0
  %v246 = vadd.f32 0.0, %v245
  %v247 = vpop.f32.mrb[0].mxu0
  %248 = vmatprep.mubr.f32.mxu0 0.0
  %249 = vmatmul.mubr.f32.gmra.mrb[0].mxu0 %v36
  %v250 = vpop.f32.mrb[0].mxu0
  %v251 = vadd.f32 0.0, %v250
  %v252 = vpop.f32.mrb[0].mxu0
  %253 = vmatprep.mubr.f32.mxu0 0.0
  %254 = vmatmul.mubr.f32.gmra.mrb[0].mxu0 %v37
  %v255 = vpop.f32.mrb[0].mxu0
  %v256 = vadd.f32 0.0, %v255
  %v257 = vpop.f32.mrb[0].mxu0
  %258 = vmatprep.mubr.f32.mxu0 0.0
  %259 = vmatmul.mubr.f32.gmra.mrb[0].mxu0 %v38
  %v260 = vpop.f32.mrb[0].mxu0
  %v261 = vadd.f32 0.0, %v260
  %v262 = vpop.f32.mrb[0].mxu0
  %263 = vmatprep.mubr.f32.mxu0 0.0
  %264 = vmatmul.mubr.f32.gmra.mrb[0].mxu0 %v39
  %v265 = vpop.f32.mrb[0].mxu0
  %v266 = vadd.f32 0.0, %v265
  %v267 = vpop.f32.mrb[0].mxu0
  %268 = vmatprep.mubr.f32.mxu0 0.0
  %269 = vmatmul.mubr.f32.gmra.mrb[0].mxu0 %v40
  %v270 = vpop.f32.mrb[0].mxu0
  %v271 = vadd.f32 0.0, %v270
  %v272 = vpop.f32.mrb[0].mxu0
  %273 = vmatprep.mubr.f32.mxu0 0.0
  %274 = vmatmul.mubr.f32.gmra.mrb[0].mxu0 %v41
  %v275 = vpop.f32.mrb[0].mxu0
  %v276 = vadd.f32 0.0, %v275
  %v277 = vpop.f32.mrb[0].mxu0
  %278 = vmatprep.mubr.f32.mxu0 0.0
  %279 = vmatmul.mubr.f32.gmra.mrb[0].mxu0 %v42
  %v280 = vpop.f32.mrb[0].mxu0
  %v281 = vadd.f32 0.0, %v280
  %v282 = vpop.f32.mrb[0].mxu0
  %283 = vdwg.mxu0
  %v284 = vmul.f32 %v126, %v126
  %v285 = vmul.f32 %v131, %v131
  %v286 = vmul.f32 %v136, %v136
  %v287 = vmul.f32 %v141, %v141
  %v288 = vmul.f32 %v146, %v146
  %v289 = vmul.f32 %v151, %v151
  %v290 = vmul.f32 %v156, %v156
  %v291 = vmul.f32 %v161, %v161
  %v292 = vmul.f32 %v166, %v166
  %v293 = vmul.f32 %v171, %v171
  %v294 = vmul.f32 %v176, %v176
  %v295 = vmul.f32 %v181, %v181
  %v296 = vmul.f32 %v186, %v186
  %v297 = vmul.f32 %v191, %v191
  %v298 = vmul.f32 %v196, %v196
  %v299 = vmul.f32 %v201, %v201
  %v300 = vmul.f32 %v206, %v206
  %v301 = vmul.f32 %v211, %v211
  %v302 = vmul.f32 %v216, %v216
  %v303 = vmul.f32 %v221, %v221
  %v304 = vmul.f32 %v226, %v226
  %v305 = vmul.f32 %v231, %v231
  %v306 = vmul.f32 %v236, %v236
  %v307 = vmul.f32 %v241, %v241
  %v308 = vmul.f32 %v246, %v246
  %v309 = vmul.f32 %v251, %v251
  %v310 = vmul.f32 %v256, %v256
  %v311 = vmul.f32 %v261, %v261
  %v312 = vmul.f32 %v266, %v266
  %v313 = vmul.f32 %v271, %v271
  %v314 = vmul.f32 %v276, %v276
  %v315 = vmul.f32 %v281, %v281
  %v316 = vadd.f32 %v284, %v300
  %v317 = vadd.f32 %v285, %v301
  %v318 = vadd.f32 %v286, %v302
  %v319 = vadd.f32 %v287, %v303
  %v320 = vadd.f32 %v288, %v304
  %v321 = vadd.f32 %v289, %v305
  %v322 = vadd.f32 %v290, %v306
  %v323 = vadd.f32 %v291, %v307
  %v324 = vadd.f32 %v292, %v308
  %v325 = vadd.f32 %v293, %v309
  %v326 = vadd.f32 %v294, %v310
  %v327 = vadd.f32 %v295, %v311
  %v328 = vadd.f32 %v296, %v312
  %v329 = vadd.f32 %v297, %v313
  %v330 = vadd.f32 %v298, %v314
  %v331 = vadd.f32 %v299, %v315
  %v332 = vlog2.pop %v316
  %v333 = vmul.f32 %v332, 0.6931472
  %v334 = vlog2.pop %v317
  %v335 = vmul.f32 %v334, 0.6931472
  %v336 = vlog2.pop %v318
  %v337 = vmul.f32 %v336, 0.6931472
  %v338 = vlog2.pop %v319
  %v339 = vmul.f32 %v338, 0.6931472
  %v340 = vlog2.pop %v320
  %v341 = vmul.f32 %v340, 0.6931472
  %v342 = vlog2.pop %v321
  %v343 = vmul.f32 %v342, 0.6931472
  %v344 = vlog2.pop %v322
  %v345 = vmul.f32 %v344, 0.6931472
  %v346 = vlog2.pop %v323
  %v347 = vmul.f32 %v346, 0.6931472
  %v348 = vlog2.pop %v324
  %v349 = vmul.f32 %v348, 0.6931472
  %v350 = vlog2.pop %v325
  %v351 = vmul.f32 %v350, 0.6931472
  %v352 = vlog2.pop %v326
  %v353 = vmul.f32 %v352, 0.6931472
  %v354 = vlog2.pop %v327
  %v355 = vmul.f32 %v354, 0.6931472
  %v356 = vlog2.pop %v328
  %v357 = vmul.f32 %v356, 0.6931472
  %v358 = vlog2.pop %v329
  %v359 = vmul.f32 %v358, 0.6931472
  %v360 = vlog2.pop %v330
  %v361 = vmul.f32 %v360, 0.6931472
  %v362 = vlog2.pop %v331
  %v363 = vmul.f32 %v362, 0.6931472
  %v364 = vmul.f32 %v333, 0.5
  %v365 = vmul.f32 %v335, 0.5
  %v366 = vmul.f32 %v337, 0.5
  %v367 = vmul.f32 %v339, 0.5
  %v368 = vmul.f32 %v341, 0.5
  %v369 = vmul.f32 %v343, 0.5
  %v370 = vmul.f32 %v345, 0.5
  %v371 = vmul.f32 %v347, 0.5
  %v372 = vmul.f32 %v349, 0.5
  %382 = vrot.lane.b32.xlu0 %v364, 119
  %v383 = vpop.permute.xlu0 %382
  %384 = vrot.lane.b32.xlu0 %v365, 119
  %v385 = vpop.permute.xlu0 %384
  %386 = vrot.lane.b32.xlu0 %v366, 119
  %v387 = vpop.permute.xlu0 %386
  %388 = vrot.lane.b32.xlu0 %v367, 119
  %v389 = vpop.permute.xlu0 %388
  %390 = vrot.lane.b32.xlu0 %v368, 119
  %v391 = vpop.permute.xlu0 %390
  %392 = vrot.lane.b32.xlu0 %v369, 119
  %v393 = vpop.permute.xlu0 %392
  %394 = vrot.lane.b32.xlu0 %v370, 119
  %v395 = vpop.permute.xlu0 %394
  %396 = vrot.lane.b32.xlu0 %v371, 119
  %v397 = vpop.permute.xlu0 %396
  %398 = vrot.lane.b32.xlu0 %v372, 119
  %v399 = vpop.permute.xlu0 %398
  %v409 = vadd.f32 %v364, %v383
  %v410 = vadd.f32 %v365, %v385
  %v411 = vadd.f32 %v366, %v387
  %v412 = vadd.f32 %v367, %v389
  %v413 = vadd.f32 %v368, %v391
  %v414 = vadd.f32 %v369, %v393
  %v415 = vadd.f32 %v370, %v395
  %v416 = vadd.f32 %v371, %v397
  %v417 = vadd.f32 %v372, %v399
  %v418 = vmul.f32 %v351, 0.5
  %v419 = vmul.f32 %v353, 0.5
  %v420 = vmul.f32 %v355, 0.5
  %v421 = vmul.f32 %v357, 0.5
  %v422 = vmul.f32 %v359, 0.5
  %v423 = vmul.f32 %v361, 0.5
  %v424 = vmul.f32 %v363, 0.5
  %432 = vrot.lane.b32.xlu0 %v418, 119
  %v433 = vpop.permute.xlu0 %432
  %434 = vrot.lane.b32.xlu0 %v419, 119
  %v435 = vpop.permute.xlu0 %434
  %436 = vrot.lane.b32.xlu0 %v420, 119
  %v437 = vpop.permute.xlu0 %436
  %438 = vrot.lane.b32.xlu0 %v421, 119
  %v439 = vpop.permute.xlu0 %438
  %440 = vrot.lane.b32.xlu0 %v422, 119
  %v441 = vpop.permute.xlu0 %440
  %442 = vrot.lane.b32.xlu0 %v423, 119
  %v443 = vpop.permute.xlu0 %442
  %444 = vrot.lane.b32.xlu0 %v424, 119
  %v445 = vpop.permute.xlu0 %444
  %v453 = vadd.f32 %v418, %v433
  %v454 = vadd.f32 %v419, %v435
  %v455 = vadd.f32 %v420, %v437
  %v456 = vadd.f32 %v421, %v439
  %v457 = vadd.f32 %v422, %v441
  %v458 = vadd.f32 %v423, %v443
  %v459 = vadd.f32 %v424, %v445
  %v460 = vmul.f32 %v409, %v409
  %v461 = vmul.f32 %v410, %v410
  %v462 = vmul.f32 %v411, %v411
  %v463 = vmul.f32 %v412, %v412
  %v464 = vmul.f32 %v413, %v413
  %v465 = vmul.f32 %v414, %v414
  %v466 = vmul.f32 %v415, %v415
  %v467 = vmul.f32 %v416, %v416
  %v468 = vmul.f32 %v417, %v417
  %vm469 = vcmask 72704
  %v470 = vsel %vm469, %v460, 0.0
  %471 = vadd.xlane.f32.xlu0 %v470
  %v472 = vpop.xlane.xlu0 %471
  %v473 = vsel %vm469, %v461, 0.0
  %474 = vadd.xlane.f32.xlu0 %v473
  %v475 = vpop.xlane.xlu0 %474
  %v476 = vsel %vm469, %v462, 0.0
  %477 = vadd.xlane.f32.xlu0 %v476
  %v478 = vpop.xlane.xlu0 %477
  %v479 = vsel %vm469, %v463, 0.0
  %480 = vadd.xlane.f32.xlu0 %v479
  %v481 = vpop.xlane.xlu0 %480
  %v482 = vsel %vm469, %v464, 0.0
  %483 = vadd.xlane.f32.xlu0 %v482
  %v484 = vpop.xlane.xlu0 %483
  %v485 = vsel %vm469, %v465, 0.0
  %486 = vadd.xlane.f32.xlu0 %v485
  %v487 = vpop.xlane.xlu0 %486
  %v488 = vsel %vm469, %v466, 0.0
  %489 = vadd.xlane.f32.xlu0 %v488
  %v490 = vpop.xlane.xlu0 %489
  %v491 = vsel %vm469, %v467, 0.0
  %492 = vadd.xlane.f32.xlu0 %v491
  %v493 = vpop.xlane.xlu0 %492
  %vm494 = vcmask 65536
  %v495 = vsel %vm494, %v468, 0.0
  %496 = vadd.xlane.f32.xlu0 %v495
  %v497 = vpop.xlane.xlu0 %496
  %v498 = vmul.f32 %v453, %v453
  %v499 = vmul.f32 %v454, %v454
  %v500 = vmul.f32 %v455, %v455
  %v501 = vmul.f32 %v456, %v456
  %v502 = vmul.f32 %v457, %v457
  %v503 = vmul.f32 %v458, %v458
  %v504 = vmul.f32 %v459, %v459
  %521 = vrot.lane.b32.xlu0 %v460, 110
  %v522 = vpop.permute.xlu0 %521
  %523 = vrot.lane.b32.xlu0 %v461, 110
  %v524 = vpop.permute.xlu0 %523
  %525 = vrot.lane.b32.xlu0 %v462, 110
  %v526 = vpop.permute.xlu0 %525
  %527 = vrot.lane.b32.xlu0 %v463, 110
  %v528 = vpop.permute.xlu0 %527
  %529 = vrot.lane.b32.xlu0 %v464, 110
  %v530 = vpop.permute.xlu0 %529
  %531 = vrot.lane.b32.xlu0 %v465, 110
  %v532 = vpop.permute.xlu0 %531
  %533 = vrot.lane.b32.xlu0 %v466, 110
  %v534 = vpop.permute.xlu0 %533
  %535 = vrot.lane.b32.xlu0 %v467, 110
  %v536 = vpop.permute.xlu0 %535
  %537 = vrot.lane.b32.xlu0 %v468, 110
  %v538 = vpop.permute.xlu0 %537
  %539 = vrot.lane.b32.xlu0 %v498, 110
  %v540 = vpop.permute.xlu0 %539
  %541 = vrot.lane.b32.xlu0 %v499, 110
  %v542 = vpop.permute.xlu0 %541
  %543 = vrot.lane.b32.xlu0 %v500, 110
  %v544 = vpop.permute.xlu0 %543
  %545 = vrot.lane.b32.xlu0 %v501, 110
  %v546 = vpop.permute.xlu0 %545
  %547 = vrot.lane.b32.xlu0 %v502, 110
  %v548 = vpop.permute.xlu0 %547
  %549 = vrot.lane.b32.xlu0 %v503, 110
  %v550 = vpop.permute.xlu0 %549
  %551 = vrot.lane.b32.xlu0 %v504, 110
  %v552 = vpop.permute.xlu0 %551
  %v569 = vsel %vm469, %v522, 0.0
  %570 = vadd.xlane.f32.xlu0 %v569
  %v571 = vpop.xlane.xlu0 %570
  %v572 = vsel %vm469, %v524, 0.0
  %573 = vadd.xlane.f32.xlu0 %v572
  %v574 = vpop.xlane.xlu0 %573
  %v575 = vsel %vm469, %v526, 0.0
  %576 = vadd.xlane.f32.xlu0 %v575
  %v577 = vpop.xlane.xlu0 %576
  %v578 = vsel %vm469, %v528, 0.0
  %579 = vadd.xlane.f32.xlu0 %v578
  %v580 = vpop.xlane.xlu0 %579
  %v581 = vsel %vm469, %v530, 0.0
  %582 = vadd.xlane.f32.xlu0 %v581
  %v583 = vpop.xlane.xlu0 %582
  %v584 = vsel %vm469, %v532, 0.0
  %585 = vadd.xlane.f32.xlu0 %v584
  %v586 = vpop.xlane.xlu0 %585
  %v587 = vsel %vm469, %v534, 0.0
  %588 = vadd.xlane.f32.xlu0 %v587
  %v589 = vpop.xlane.xlu0 %588
  %v590 = vsel %vm469, %v536, 0.0
  %591 = vadd.xlane.f32.xlu0 %v590
  %v592 = vpop.xlane.xlu0 %591
  %v593 = vsel %vm469, %v538, 0.0
  %594 = vadd.xlane.f32.xlu0 %v593
  %v595 = vpop.xlane.xlu0 %594
  %v596 = vsel %vm469, %v540, 0.0
  %597 = vadd.xlane.f32.xlu0 %v596
  %v598 = vpop.xlane.xlu0 %597
  %v599 = vsel %vm469, %v542, 0.0
  %600 = vadd.xlane.f32.xlu0 %v599
  %v601 = vpop.xlane.xlu0 %600
  %v602 = vsel %vm469, %v544, 0.0
  %603 = vadd.xlane.f32.xlu0 %v602
  %v604 = vpop.xlane.xlu0 %603
  %v605 = vsel %vm469, %v546, 0.0
  %606 = vadd.xlane.f32.xlu0 %v605
  %v607 = vpop.xlane.xlu0 %606
  %v608 = vsel %vm469, %v548, 0.0
  %609 = vadd.xlane.f32.xlu0 %v608
  %v610 = vpop.xlane.xlu0 %609
  %v611 = vsel %vm469, %v550, 0.0
  %612 = vadd.xlane.f32.xlu0 %v611
  %v613 = vpop.xlane.xlu0 %612
  %v614 = vsel %vm469, %v552, 0.0
  %615 = vadd.xlane.f32.xlu0 %v614
  %v616 = vpop.xlane.xlu0 %615
  %617 = vxpose.xlu0.b32.start [1/16] %v571, 128
  %618 = vxpose.xlu0.b32.cont [2/16] %v574, 128
  %619 = vxpose.xlu0.b32.cont [3/16] %v577, 128
  %620 = vxpose.xlu0.b32.cont [4/16] %v580, 128
  %621 = vxpose.xlu0.b32.cont [5/16] %v583, 128
  %622 = vxpose.xlu0.b32.cont [6/16] %v586, 128
  %623 = vxpose.xlu0.b32.cont [7/16] %v589, 128
  %624 = vxpose.xlu0.b32.cont [8/16] %v592, 128
  %625 = vxpose.xlu0.b32.cont [9/16] %v595, 128
  %626 = vxpose.xlu0.b32.cont [10/16] %v598, 128
  %627 = vxpose.xlu0.b32.cont [11/16] %v601, 128
  %628 = vxpose.xlu0.b32.cont [12/16] %v604, 128
  %629 = vxpose.xlu0.b32.cont [13/16] %v607, 128
  %630 = vxpose.xlu0.b32.cont [14/16] %v610, 128
  %631 = vxpose.xlu0.b32.cont [15/16] %v613, 128
  %632 = vxpose.xlu0.b32.end [16/16] %v616, 128
  %v633 = vpop.trf.xlu0
  %v634 = vpop.trf.xlu0
  %v635 = vpop.trf.xlu0
  %v636 = vpop.trf.xlu0
  %v637 = vpop.trf.xlu0
  %v638 = vpop.trf.xlu0
  %v639 = vpop.trf.xlu0
  %v640 = vpop.trf.xlu0
  %v641 = vpop.trf.xlu0
  %v642 = vpop.trf.xlu0
  %v643 = vpop.trf.xlu0
  %v644 = vpop.trf.xlu0
  %v645 = vpop.trf.xlu0
  %v646 = vpop.trf.xlu0
  %v647 = vpop.trf.xlu0
  %v648 = vpop.trf.xlu0
  %665 = vrot.lane.b32.xlu0 %v409, 110
  %v666 = vpop.permute.xlu0 %665
  %667 = vrot.lane.b32.xlu0 %v410, 110
  %v668 = vpop.permute.xlu0 %667
  %669 = vrot.lane.b32.xlu0 %v411, 110
  %v670 = vpop.permute.xlu0 %669
  %671 = vrot.lane.b32.xlu0 %v412, 110
  %v672 = vpop.permute.xlu0 %671
  %673 = vrot.lane.b32.xlu0 %v413, 110
  %v674 = vpop.permute.xlu0 %673
  %675 = vrot.lane.b32.xlu0 %v414, 110
  %v676 = vpop.permute.xlu0 %675
  %677 = vrot.lane.b32.xlu0 %v415, 110
  %v678 = vpop.permute.xlu0 %677
  %679 = vrot.lane.b32.xlu0 %v416, 110
  %v680 = vpop.permute.xlu0 %679
  %681 = vrot.lane.b32.xlu0 %v417, 110
  %v682 = vpop.permute.xlu0 %681
  %683 = vrot.lane.b32.xlu0 %v453, 110
  %v684 = vpop.permute.xlu0 %683
  %685 = vrot.lane.b32.xlu0 %v454, 110
  %v686 = vpop.permute.xlu0 %685
  %687 = vrot.lane.b32.xlu0 %v455, 110
  %v688 = vpop.permute.xlu0 %687
  %689 = vrot.lane.b32.xlu0 %v456, 110
  %v690 = vpop.permute.xlu0 %689
  %691 = vrot.lane.b32.xlu0 %v457, 110
  %v692 = vpop.permute.xlu0 %691
  %693 = vrot.lane.b32.xlu0 %v458, 110
  %v694 = vpop.permute.xlu0 %693
  %695 = vrot.lane.b32.xlu0 %v459, 110
  %v696 = vpop.permute.xlu0 %695
  %v697 = vsel %vm469, %v409, 0
  %v699 = vsel %vm469, %v410, 0
  %v701 = vsel %vm469, %v411, 0
  %v703 = vsel %vm469, %v412, 0
  %v705 = vsel %vm469, %v413, 0
  %v707 = vsel %vm469, %v414, 0
  %v709 = vsel %vm469, %v415, 0
  %v711 = vsel %vm469, %v416, 0
  %v713 = vsel %vm469, %v417, 0
  %v715 = vsel %vm469, %v666, 0
  %v717 = vsel %vm469, %v668, 0
  %v719 = vsel %vm469, %v670, 0
  %v721 = vsel %vm469, %v672, 0
  %v723 = vsel %vm469, %v674, 0
  %v725 = vsel %vm469, %v676, 0
  %v727 = vsel %vm469, %v678, 0
  %v729 = vsel %vm469, %v680, 0
  %v731 = vsel %vm469, %v682, 0
  %v733 = vsel %vm469, %v684, 0
  %v735 = vsel %vm469, %v686, 0
  %v737 = vsel %vm469, %v688, 0
  %v739 = vsel %vm469, %v690, 0
  %v741 = vsel %vm469, %v692, 0
  %v743 = vsel %vm469, %v694, 0
  %v745 = vsel %vm469, %v696, 0
  %747 = vmatprep.subr.mxu0 0.0
  %748 = vmatpush1.xpose.msra.mxu0 %v715
  %749 = vmatprep.subr.mxu0 0.0
  %750 = vmatpush1.xpose.msra.mxu0 %v717
  %751 = vmatprep.subr.mxu0 0.0
  %752 = vmatpush1.xpose.msra.mxu0 %v719
  %753 = vmatprep.subr.mxu0 0.0
  %754 = vmatpush1.xpose.msra.mxu0 %v721
  %755 = vmatprep.subr.mxu0 0.0
  %756 = vmatpush1.xpose.msra.mxu0 %v723
  %757 = vmatprep.subr.mxu0 0.0
  %758 = vmatpush1.xpose.msra.mxu0 %v725
  %759 = vmatprep.subr.mxu0 0.0
  %760 = vmatpush1.xpose.msra.mxu0 %v727
  %761 = vmatprep.subr.mxu0 0.0
  %762 = vmatpush1.xpose.msra.mxu0 %v729
  %763 = vmatprep.subr.mxu0 0.0
  %764 = vmatpush1.xpose.msra.mxu0 %v731
  %765 = vmatprep.subr.mxu0 0.0
  %766 = vmatpush1.xpose.msra.mxu0 %v733
  %767 = vmatprep.subr.mxu0 0.0
  %768 = vmatpush1.xpose.msra.mxu0 %v735
  %769 = vmatprep.subr.mxu0 0.0
  %770 = vmatpush1.xpose.msra.mxu0 %v737
  %771 = vmatprep.subr.mxu0 0.0
  %772 = vmatpush1.xpose.msra.mxu0 %v739
  %773 = vmatprep.subr.mxu0 0.0
  %774 = vmatpush1.xpose.msra.mxu0 %v741
  %775 = vmatprep.subr.mxu0 0.0
  %776 = vmatpush1.xpose.msra.mxu0 %v743
  %777 = vmatprep.subr.mxu0 0.0
  %778 = vmatpush1.xpose.msra.mxu0 %v745
  %779 = vmatprep.subr.mxu0 0.0
  %780 = vmatpush1.xpose.msra.mxu0 0.0
  %781 = vmatprep.subr.mxu0 0.0
  %782 = vmatpush1.xpose.msra.mxu0 0.0
  %783 = vmatprep.subr.mxu0 0.0
  %784 = vmatpush1.xpose.msra.mxu0 0.0
  %785 = vmatprep.subr.mxu0 0.0
  %786 = vmatpush1.xpose.msra.mxu0 0.0
  %787 = vmatprep.subr.mxu0 0.0
  %788 = vmatpush1.xpose.msra.mxu0 0.0
  %789 = vmatprep.subr.mxu0 0.0
  %790 = vmatpush1.xpose.msra.mxu0 0.0
  %791 = vmatprep.subr.mxu0 0.0
  %792 = vmatpush1.xpose.msra.mxu0 0.0
  %793 = vmatprep.subr.mxu0 0.0
  %794 = vmatpush1.xpose.msra.mxu0 0.0
  %795 = vmatprep.subr.mxu0 0.0
  %796 = vmatpush1.xpose.msra.mxu0 0.0
  %797 = vmatprep.subr.mxu0 0.0
  %798 = vmatpush1.xpose.msra.mxu0 0.0
  %799 = vmatprep.subr.mxu0 0.0
  %800 = vmatpush1.xpose.msra.mxu0 0.0
  %801 = vmatprep.subr.mxu0 0.0
  %802 = vmatpush1.xpose.msra.mxu0 0.0
  %803 = vmatprep.subr.mxu0 0.0
  %804 = vmatpush1.xpose.msra.mxu0 0.0
  %805 = vmatprep.subr.mxu0 0.0
  %806 = vmatpush1.xpose.msra.mxu0 0.0
  %807 = vmatprep.subr.mxu0 0.0
  %808 = vmatpush1.xpose.msra.mxu0 0.0
  %809 = vmatprep.subr.mxu0 0.0
  %810 = vmatpush1.xpose.msra.mxu0 0.0
  %811 = vmatprep.mubr.f32.mxu0 0.0
  %812 = vmatmul.mubr.f32.gmra.mrb[0].mxu0 %v697
  %v813 = vpop.f32.mrb[0].mxu0
  %v814 = vadd.f32 0.0, %v813
  %v815 = vpop.f32.mrb[0].mxu0
  %816 = vmatprep.mubr.f32.mxu0 0.0
  %817 = vmatmul.mubr.f32.gmra.mrb[0].mxu0 %v699
  %v818 = vpop.f32.mrb[0].mxu0
  %v819 = vadd.f32 0.0, %v818
  %v820 = vpop.f32.mrb[0].mxu0
  %821 = vmatprep.mubr.f32.mxu0 0.0
  %822 = vmatmul.mubr.f32.gmra.mrb[0].mxu0 %v701
  %v823 = vpop.f32.mrb[0].mxu0
  %v824 = vadd.f32 0.0, %v823
  %v825 = vpop.f32.mrb[0].mxu0
  %826 = vmatprep.mubr.f32.mxu0 0.0
  %827 = vmatmul.mubr.f32.gmra.mrb[0].mxu0 %v703
  %v828 = vpop.f32.mrb[0].mxu0
  %v829 = vadd.f32 0.0, %v828
  %v830 = vpop.f32.mrb[0].mxu0
  %831 = vmatprep.mubr.f32.mxu0 0.0
  %832 = vmatmul.mubr.f32.gmra.mrb[0].mxu0 %v705
  %v833 = vpop.f32.mrb[0].mxu0
  %v834 = vadd.f32 0.0, %v833
  %v835 = vpop.f32.mrb[0].mxu0
  %836 = vmatprep.mubr.f32.mxu0 0.0
  %837 = vmatmul.mubr.f32.gmra.mrb[0].mxu0 %v707
  %v838 = vpop.f32.mrb[0].mxu0
  %v839 = vadd.f32 0.0, %v838
  %v840 = vpop.f32.mrb[0].mxu0
  %841 = vmatprep.mubr.f32.mxu0 0.0
  %842 = vmatmul.mubr.f32.gmra.mrb[0].mxu0 %v709
  %v843 = vpop.f32.mrb[0].mxu0
  %v844 = vadd.f32 0.0, %v843
  %v845 = vpop.f32.mrb[0].mxu0
  %846 = vmatprep.mubr.f32.mxu0 0.0
  %847 = vmatmul.mubr.f32.gmra.mrb[0].mxu0 %v711
  %v848 = vpop.f32.mrb[0].mxu0
  %v849 = vadd.f32 0.0, %v848
  %v850 = vpop.f32.mrb[0].mxu0
  %851 = vmatprep.mubr.f32.mxu0 0.0
  %852 = vmatmul.mubr.f32.gmra.mrb[0].mxu0 %v713
  %v853 = vpop.f32.mrb[0].mxu0
  %v854 = vadd.f32 0.0, %v853
  %v855 = vpop.f32.mrb[0].mxu0
  %856 = vdwg.mxu0
  %v857 = vlaneseq
  %v858 = vshrl.u32 %v857, 7
  %v859 = vsub.s32 0, %v858
  %v860 = vrot.slane %v633, %v859
  %v861 = vadd.f32 %v472, %v860
  %v862 = vadd.f32 %v475, %v860
  %v863 = vadd.f32 %v478, %v860
  %v864 = vadd.f32 %v481, %v860
  %v865 = vadd.f32 %v484, %v860
  %v866 = vadd.f32 %v487, %v860
  %v867 = vadd.f32 %v490, %v860
  %v868 = vadd.f32 %v493, %v860
  %v869 = vadd.f32 %v497, %v860
  %v870 = vmul.f32 %v814, 2.0
  %v871 = vmul.f32 %v819, 2.0
  %v872 = vmul.f32 %v824, 2.0
  %v873 = vmul.f32 %v829, 2.0
  %v874 = vmul.f32 %v834, 2.0
  %v875 = vmul.f32 %v839, 2.0
  %v876 = vmul.f32 %v844, 2.0
  %v877 = vmul.f32 %v849, 2.0
  %v878 = vmul.f32 %v854, 2.0
  %v879 = vsub.f32 %v861, %v870
  %v880 = vsub.f32 %v862, %v871
  %v881 = vsub.f32 %v863, %v872
  %v882 = vsub.f32 %v864, %v873
  %v883 = vsub.f32 %v865, %v874
  %v884 = vsub.f32 %v866, %v875
  %v885 = vsub.f32 %v867, %v876
  %v886 = vsub.f32 %v868, %v877
  %v887 = vsub.f32 %v869, %v878
  %v888 = vmax.f32 %v879, 0.0
  %v889 = vmax.f32 %v880, 0.0
  %v890 = vmax.f32 %v881, 0.0
  %v891 = vmax.f32 %v882, 0.0
  %v892 = vmax.f32 %v883, 0.0
  %v893 = vmax.f32 %v884, 0.0
  %v894 = vmax.f32 %v885, 0.0
  %v895 = vmax.f32 %v886, 0.0
  %v896 = vmax.f32 %v887, 0.0
  %v897 = vrsqrt.pop %v888
  %v898 = vmul.f32 %v888, %v897
  %vm899 = vcmp.eq.f32.partialorder %v888, inf
  %v900 = vsel %vm899, %v888, %v898
  %vm901 = vcmp.eq.f32.partialorder %v888, 0.0
  %v902 = vand.u32 %v888, 2147483648
  %v903 = vsel %vm901, %v902, %v900
  %v904 = vrsqrt.pop %v889
  %v905 = vmul.f32 %v889, %v904
  %vm906 = vcmp.eq.f32.partialorder %v889, inf
  %v907 = vsel %vm906, %v889, %v905
  %vm908 = vcmp.eq.f32.partialorder %v889, 0.0
  %v909 = vand.u32 %v889, 2147483648
  %v910 = vsel %vm908, %v909, %v907
  %v911 = vrsqrt.pop %v890
  %v912 = vmul.f32 %v890, %v911
  %vm913 = vcmp.eq.f32.partialorder %v890, inf
  %v914 = vsel %vm913, %v890, %v912
  %vm915 = vcmp.eq.f32.partialorder %v890, 0.0
  %v916 = vand.u32 %v890, 2147483648
  %v917 = vsel %vm915, %v916, %v914
  %v918 = vrsqrt.pop %v891
  %v919 = vmul.f32 %v891, %v918
  %vm920 = vcmp.eq.f32.partialorder %v891, inf
  %v921 = vsel %vm920, %v891, %v919
  %vm922 = vcmp.eq.f32.partialorder %v891, 0.0
  %v923 = vand.u32 %v891, 2147483648
  %v924 = vsel %vm922, %v923, %v921
  %v925 = vrsqrt.pop %v892
  %v926 = vmul.f32 %v892, %v925
  %vm927 = vcmp.eq.f32.partialorder %v892, inf
  %v928 = vsel %vm927, %v892, %v926
  %vm929 = vcmp.eq.f32.partialorder %v892, 0.0
  %v930 = vand.u32 %v892, 2147483648
  %v931 = vsel %vm929, %v930, %v928
  %v932 = vrsqrt.pop %v893
  %v933 = vmul.f32 %v893, %v932
  %vm934 = vcmp.eq.f32.partialorder %v893, inf
  %v935 = vsel %vm934, %v893, %v933
  %vm936 = vcmp.eq.f32.partialorder %v893, 0.0
  %v937 = vand.u32 %v893, 2147483648
  %v938 = vsel %vm936, %v937, %v935
  %v939 = vrsqrt.pop %v894
  %v940 = vmul.f32 %v894, %v939
  %vm941 = vcmp.eq.f32.partialorder %v894, inf
  %v942 = vsel %vm941, %v894, %v940
  %vm943 = vcmp.eq.f32.partialorder %v894, 0.0
  %v944 = vand.u32 %v894, 2147483648
  %v945 = vsel %vm943, %v944, %v942
  %v946 = vrsqrt.pop %v895
  %v947 = vmul.f32 %v895, %v946
  %vm948 = vcmp.eq.f32.partialorder %v895, inf
  %v949 = vsel %vm948, %v895, %v947
  %vm950 = vcmp.eq.f32.partialorder %v895, 0.0
  %v951 = vand.u32 %v895, 2147483648
  %v952 = vsel %vm950, %v951, %v949
  %v953 = vrsqrt.pop %v896
  %v954 = vmul.f32 %v896, %v953
  %vm955 = vcmp.eq.f32.partialorder %v896, inf
  %v956 = vsel %vm955, %v896, %v954
  %vm957 = vcmp.eq.f32.partialorder %v896, 0.0
  %v958 = vand.u32 %v896, 2147483648
  %v959 = vsel %vm957, %v958, %v956
  %960 = vst [vmem:[%s2] sm:$0xff] %v903
  %961 = vst [vmem:[%s2 + $0x8] sm:$0xff] %v910
  %962 = vst [vmem:[%s2 + $0x10] sm:$0xff] %v917
  %963 = vst [vmem:[%s2 + $0x18] sm:$0xff] %v924
  %964 = vst [vmem:[%s2 + $0x20] sm:$0xff] %v931
  %965 = vst [vmem:[%s2 + $0x28] sm:$0xff] %v938
  %966 = vst [vmem:[%s2 + $0x30] sm:$0xff] %v945
  %967 = vst [vmem:[%s2 + $0x38] sm:$0xff] %v952
  %968 = vst [vmem:[%s2 + $0x40] sm:$0x1] %v959
  %v969 = vmul.f32 %v333, -0.5
  %v970 = vmul.f32 %v335, -0.5
  %v971 = vmul.f32 %v337, -0.5
  %v972 = vmul.f32 %v339, -0.5
  %v973 = vmul.f32 %v341, -0.5
  %v974 = vmul.f32 %v343, -0.5
  %v975 = vmul.f32 %v345, -0.5
  %v976 = vmul.f32 %v347, -0.5
  %v977 = vmul.f32 %v349, -0.5
  %987 = vrot.lane.b32.xlu0 %v969, 119
  %v988 = vpop.permute.xlu0 %987
  %989 = vrot.lane.b32.xlu0 %v970, 119
  %v990 = vpop.permute.xlu0 %989
  %991 = vrot.lane.b32.xlu0 %v971, 119
  %v992 = vpop.permute.xlu0 %991
  %993 = vrot.lane.b32.xlu0 %v972, 119
  %v994 = vpop.permute.xlu0 %993
  %995 = vrot.lane.b32.xlu0 %v973, 119
  %v996 = vpop.permute.xlu0 %995
  %997 = vrot.lane.b32.xlu0 %v974, 119
  %v998 = vpop.permute.xlu0 %997
  %999 = vrot.lane.b32.xlu0 %v975, 119
  %v1000 = vpop.permute.xlu0 %999
  %1001 = vrot.lane.b32.xlu0 %v976, 119
  %v1002 = vpop.permute.xlu0 %1001
  %1003 = vrot.lane.b32.xlu0 %v977, 119
  %v1004 = vpop.permute.xlu0 %1003
  %v1014 = vadd.f32 %v364, %v988
  %v1015 = vadd.f32 %v365, %v990
  %v1016 = vadd.f32 %v366, %v992
  %v1017 = vadd.f32 %v367, %v994
  %v1018 = vadd.f32 %v368, %v996
  %v1019 = vadd.f32 %v369, %v998
  %v1020 = vadd.f32 %v370, %v1000
  %v1021 = vadd.f32 %v371, %v1002
  %v1022 = vadd.f32 %v372, %v1004
  %v1023 = vmul.f32 %v351, -0.5
  %v1024 = vmul.f32 %v353, -0.5
  %v1025 = vmul.f32 %v355, -0.5
  %v1026 = vmul.f32 %v357, -0.5
  %v1027 = vmul.f32 %v359, -0.5
  %v1028 = vmul.f32 %v361, -0.5
  %v1029 = vmul.f32 %v363, -0.5
  %1037 = vrot.lane.b32.xlu0 %v1023, 119
  %v1038 = vpop.permute.xlu0 %1037
  %1039 = vrot.lane.b32.xlu0 %v1024, 119
  %v1040 = vpop.permute.xlu0 %1039
  %1041 = vrot.lane.b32.xlu0 %v1025, 119
  %v1042 = vpop.permute.xlu0 %1041
  %1043 = vrot.lane.b32.xlu0 %v1026, 119
  %v1044 = vpop.permute.xlu0 %1043
  %1045 = vrot.lane.b32.xlu0 %v1027, 119
  %v1046 = vpop.permute.xlu0 %1045
  %1047 = vrot.lane.b32.xlu0 %v1028, 119
  %v1048 = vpop.permute.xlu0 %1047
  %1049 = vrot.lane.b32.xlu0 %v1029, 119
  %v1050 = vpop.permute.xlu0 %1049
  %v1058 = vadd.f32 %v418, %v1038
  %v1059 = vadd.f32 %v419, %v1040
  %v1060 = vadd.f32 %v420, %v1042
  %v1061 = vadd.f32 %v421, %v1044
  %v1062 = vadd.f32 %v422, %v1046
  %v1063 = vadd.f32 %v423, %v1048
  %v1064 = vadd.f32 %v424, %v1050
  %v1065 = vmul.f32 %v1014, %v1014
  %v1066 = vmul.f32 %v1015, %v1015
  %v1067 = vmul.f32 %v1016, %v1016
  %v1068 = vmul.f32 %v1017, %v1017
  %v1069 = vmul.f32 %v1018, %v1018
  %v1070 = vmul.f32 %v1019, %v1019
  %v1071 = vmul.f32 %v1020, %v1020
  %v1072 = vmul.f32 %v1021, %v1021
  %v1073 = vmul.f32 %v1022, %v1022
  %v1074 = vsel %vm469, %v1065, 0.0
  %1075 = vadd.xlane.f32.xlu0 %v1074
  %v1076 = vpop.xlane.xlu0 %1075
  %v1077 = vsel %vm469, %v1066, 0.0
  %1078 = vadd.xlane.f32.xlu0 %v1077
  %v1079 = vpop.xlane.xlu0 %1078
  %v1080 = vsel %vm469, %v1067, 0.0
  %1081 = vadd.xlane.f32.xlu0 %v1080
  %v1082 = vpop.xlane.xlu0 %1081
  %v1083 = vsel %vm469, %v1068, 0.0
  %1084 = vadd.xlane.f32.xlu0 %v1083
  %v1085 = vpop.xlane.xlu0 %1084
  %v1086 = vsel %vm469, %v1069, 0.0
  %1087 = vadd.xlane.f32.xlu0 %v1086
  %v1088 = vpop.xlane.xlu0 %1087
  %v1089 = vsel %vm469, %v1070, 0.0
  %1090 = vadd.xlane.f32.xlu0 %v1089
  %v1091 = vpop.xlane.xlu0 %1090
  %v1092 = vsel %vm469, %v1071, 0.0
  %1093 = vadd.xlane.f32.xlu0 %v1092
  %v1094 = vpop.xlane.xlu0 %1093
  %v1095 = vsel %vm469, %v1072, 0.0
  %1096 = vadd.xlane.f32.xlu0 %v1095
  %v1097 = vpop.xlane.xlu0 %1096
  %v1098 = vsel %vm494, %v1073, 0.0
  %1099 = vadd.xlane.f32.xlu0 %v1098
  %v1100 = vpop.xlane.xlu0 %1099
  %v1101 = vmul.f32 %v1058, %v1058
  %v1102 = vmul.f32 %v1059, %v1059
  %v1103 = vmul.f32 %v1060, %v1060
  %v1104 = vmul.f32 %v1061, %v1061
  %v1105 = vmul.f32 %v1062, %v1062
  %v1106 = vmul.f32 %v1063, %v1063
  %v1107 = vmul.f32 %v1064, %v1064
  %1124 = vrot.lane.b32.xlu0 %v1065, 110
  %v1125 = vpop.permute.xlu0 %1124
  %1126 = vrot.lane.b32.xlu0 %v1066, 110
  %v1127 = vpop.permute.xlu0 %1126
  %1128 = vrot.lane.b32.xlu0 %v1067, 110
  %v1129 = vpop.permute.xlu0 %1128
  %1130 = vrot.lane.b32.xlu0 %v1068, 110
  %v1131 = vpop.permute.xlu0 %1130
  %1132 = vrot.lane.b32.xlu0 %v1069, 110
  %v1133 = vpop.permute.xlu0 %1132
  %1134 = vrot.lane.b32.xlu0 %v1070, 110
  %v1135 = vpop.permute.xlu0 %1134
  %1136 = vrot.lane.b32.xlu0 %v1071, 110
  %v1137 = vpop.permute.xlu0 %1136
  %1138 = vrot.lane.b32.xlu0 %v1072, 110
  %v1139 = vpop.permute.xlu0 %1138
  %1140 = vrot.lane.b32.xlu0 %v1073, 110
  %v1141 = vpop.permute.xlu0 %1140
  %1142 = vrot.lane.b32.xlu0 %v1101, 110
  %v1143 = vpop.permute.xlu0 %1142
  %1144 = vrot.lane.b32.xlu0 %v1102, 110
  %v1145 = vpop.permute.xlu0 %1144
  %1146 = vrot.lane.b32.xlu0 %v1103, 110
  %v1147 = vpop.permute.xlu0 %1146
  %1148 = vrot.lane.b32.xlu0 %v1104, 110
  %v1149 = vpop.permute.xlu0 %1148
  %1150 = vrot.lane.b32.xlu0 %v1105, 110
  %v1151 = vpop.permute.xlu0 %1150
  %1152 = vrot.lane.b32.xlu0 %v1106, 110
  %v1153 = vpop.permute.xlu0 %1152
  %1154 = vrot.lane.b32.xlu0 %v1107, 110
  %v1155 = vpop.permute.xlu0 %1154
  %v1172 = vsel %vm469, %v1125, 0.0
  %1173 = vadd.xlane.f32.xlu0 %v1172
  %v1174 = vpop.xlane.xlu0 %1173
  %v1175 = vsel %vm469, %v1127, 0.0
  %1176 = vadd.xlane.f32.xlu0 %v1175
  %v1177 = vpop.xlane.xlu0 %1176
  %v1178 = vsel %vm469, %v1129, 0.0
  %1179 = vadd.xlane.f32.xlu0 %v1178
  %v1180 = vpop.xlane.xlu0 %1179
  %v1181 = vsel %vm469, %v1131, 0.0
  %1182 = vadd.xlane.f32.xlu0 %v1181
  %v1183 = vpop.xlane.xlu0 %1182
  %v1184 = vsel %vm469, %v1133, 0.0
  %1185 = vadd.xlane.f32.xlu0 %v1184
  %v1186 = vpop.xlane.xlu0 %1185
  %v1187 = vsel %vm469, %v1135, 0.0
  %1188 = vadd.xlane.f32.xlu0 %v1187
  %v1189 = vpop.xlane.xlu0 %1188
  %v1190 = vsel %vm469, %v1137, 0.0
  %1191 = vadd.xlane.f32.xlu0 %v1190
  %v1192 = vpop.xlane.xlu0 %1191
  %v1193 = vsel %vm469, %v1139, 0.0
  %1194 = vadd.xlane.f32.xlu0 %v1193
  %v1195 = vpop.xlane.xlu0 %1194
  %v1196 = vsel %vm469, %v1141, 0.0
  %1197 = vadd.xlane.f32.xlu0 %v1196
  %v1198 = vpop.xlane.xlu0 %1197
  %v1199 = vsel %vm469, %v1143, 0.0
  %1200 = vadd.xlane.f32.xlu0 %v1199
  %v1201 = vpop.xlane.xlu0 %1200
  %v1202 = vsel %vm469, %v1145, 0.0
  %1203 = vadd.xlane.f32.xlu0 %v1202
  %v1204 = vpop.xlane.xlu0 %1203
  %v1205 = vsel %vm469, %v1147, 0.0
  %1206 = vadd.xlane.f32.xlu0 %v1205
  %v1207 = vpop.xlane.xlu0 %1206
  %v1208 = vsel %vm469, %v1149, 0.0
  %1209 = vadd.xlane.f32.xlu0 %v1208
  %v1210 = vpop.xlane.xlu0 %1209
  %v1211 = vsel %vm469, %v1151, 0.0
  %1212 = vadd.xlane.f32.xlu0 %v1211
  %v1213 = vpop.xlane.xlu0 %1212
  %v1214 = vsel %vm469, %v1153, 0.0
  %1215 = vadd.xlane.f32.xlu0 %v1214
  %v1216 = vpop.xlane.xlu0 %1215
  %v1217 = vsel %vm469, %v1155, 0.0
  %1218 = vadd.xlane.f32.xlu0 %v1217
  %v1219 = vpop.xlane.xlu0 %1218
  %1220 = vxpose.xlu0.b32.start [1/16] %v1174, 128
  %1221 = vxpose.xlu0.b32.cont [2/16] %v1177, 128
  %1222 = vxpose.xlu0.b32.cont [3/16] %v1180, 128
  %1223 = vxpose.xlu0.b32.cont [4/16] %v1183, 128
  %1224 = vxpose.xlu0.b32.cont [5/16] %v1186, 128
  %1225 = vxpose.xlu0.b32.cont [6/16] %v1189, 128
  %1226 = vxpose.xlu0.b32.cont [7/16] %v1192, 128
  %1227 = vxpose.xlu0.b32.cont [8/16] %v1195, 128
  %1228 = vxpose.xlu0.b32.cont [9/16] %v1198, 128
  %1229 = vxpose.xlu0.b32.cont [10/16] %v1201, 128
  %1230 = vxpose.xlu0.b32.cont [11/16] %v1204, 128
  %1231 = vxpose.xlu0.b32.cont [12/16] %v1207, 128
  %1232 = vxpose.xlu0.b32.cont [13/16] %v1210, 128
  %1233 = vxpose.xlu0.b32.cont [14/16] %v1213, 128
  %1234 = vxpose.xlu0.b32.cont [15/16] %v1216, 128
  %1235 = vxpose.xlu0.b32.end [16/16] %v1219, 128
  %v1236 = vpop.trf.xlu0
  %v1237 = vpop.trf.xlu0
  %v1238 = vpop.trf.xlu0
  %v1239 = vpop.trf.xlu0
  %v1240 = vpop.trf.xlu0
  %v1241 = vpop.trf.xlu0
  %v1242 = vpop.trf.xlu0
  %v1243 = vpop.trf.xlu0
  %v1244 = vpop.trf.xlu0
  %v1245 = vpop.trf.xlu0
  %v1246 = vpop.trf.xlu0
  %v1247 = vpop.trf.xlu0
  %v1248 = vpop.trf.xlu0
  %v1249 = vpop.trf.xlu0
  %v1250 = vpop.trf.xlu0
  %v1251 = vpop.trf.xlu0
  %1268 = vrot.lane.b32.xlu0 %v1014, 110
  %v1269 = vpop.permute.xlu0 %1268
  %1270 = vrot.lane.b32.xlu0 %v1015, 110
  %v1271 = vpop.permute.xlu0 %1270
  %1272 = vrot.lane.b32.xlu0 %v1016, 110
  %v1273 = vpop.permute.xlu0 %1272
  %1274 = vrot.lane.b32.xlu0 %v1017, 110
  %v1275 = vpop.permute.xlu0 %1274
  %1276 = vrot.lane.b32.xlu0 %v1018, 110
  %v1277 = vpop.permute.xlu0 %1276
  %1278 = vrot.lane.b32.xlu0 %v1019, 110
  %v1279 = vpop.permute.xlu0 %1278
  %1280 = vrot.lane.b32.xlu0 %v1020, 110
  %v1281 = vpop.permute.xlu0 %1280
  %1282 = vrot.lane.b32.xlu0 %v1021, 110
  %v1283 = vpop.permute.xlu0 %1282
  %1284 = vrot.lane.b32.xlu0 %v1022, 110
  %v1285 = vpop.permute.xlu0 %1284
  %1286 = vrot.lane.b32.xlu0 %v1058, 110
  %v1287 = vpop.permute.xlu0 %1286
  %1288 = vrot.lane.b32.xlu0 %v1059, 110
  %v1289 = vpop.permute.xlu0 %1288
  %1290 = vrot.lane.b32.xlu0 %v1060, 110
  %v1291 = vpop.permute.xlu0 %1290
  %1292 = vrot.lane.b32.xlu0 %v1061, 110
  %v1293 = vpop.permute.xlu0 %1292
  %1294 = vrot.lane.b32.xlu0 %v1062, 110
  %v1295 = vpop.permute.xlu0 %1294
  %1296 = vrot.lane.b32.xlu0 %v1063, 110
  %v1297 = vpop.permute.xlu0 %1296
  %1298 = vrot.lane.b32.xlu0 %v1064, 110
  %v1299 = vpop.permute.xlu0 %1298
  %v1300 = vsel %vm469, %v1014, 0
  %v1302 = vsel %vm469, %v1015, 0
  %v1304 = vsel %vm469, %v1016, 0
  %v1306 = vsel %vm469, %v1017, 0
  %v1308 = vsel %vm469, %v1018, 0
  %v1310 = vsel %vm469, %v1019, 0
  %v1312 = vsel %vm469, %v1020, 0
  %v1314 = vsel %vm469, %v1021, 0
  %v1316 = vsel %vm469, %v1022, 0
  %v1318 = vsel %vm469, %v1269, 0
  %v1320 = vsel %vm469, %v1271, 0
  %v1322 = vsel %vm469, %v1273, 0
  %v1324 = vsel %vm469, %v1275, 0
  %v1326 = vsel %vm469, %v1277, 0
  %v1328 = vsel %vm469, %v1279, 0
  %v1330 = vsel %vm469, %v1281, 0
  %v1332 = vsel %vm469, %v1283, 0
  %v1334 = vsel %vm469, %v1285, 0
  %v1336 = vsel %vm469, %v1287, 0
  %v1338 = vsel %vm469, %v1289, 0
  %v1340 = vsel %vm469, %v1291, 0
  %v1342 = vsel %vm469, %v1293, 0
  %v1344 = vsel %vm469, %v1295, 0
  %v1346 = vsel %vm469, %v1297, 0
  %v1348 = vsel %vm469, %v1299, 0
  %1350 = vmatprep.subr.mxu0 0.0
  %1351 = vmatpush1.xpose.msra.mxu0 %v1318
  %1352 = vmatprep.subr.mxu0 0.0
  %1353 = vmatpush1.xpose.msra.mxu0 %v1320
  %1354 = vmatprep.subr.mxu0 0.0
  %1355 = vmatpush1.xpose.msra.mxu0 %v1322
  %1356 = vmatprep.subr.mxu0 0.0
  %1357 = vmatpush1.xpose.msra.mxu0 %v1324
  %1358 = vmatprep.subr.mxu0 0.0
  %1359 = vmatpush1.xpose.msra.mxu0 %v1326
  %1360 = vmatprep.subr.mxu0 0.0
  %1361 = vmatpush1.xpose.msra.mxu0 %v1328
  %1362 = vmatprep.subr.mxu0 0.0
  %1363 = vmatpush1.xpose.msra.mxu0 %v1330
  %1364 = vmatprep.subr.mxu0 0.0
  %1365 = vmatpush1.xpose.msra.mxu0 %v1332
  %1366 = vmatprep.subr.mxu0 0.0
  %1367 = vmatpush1.xpose.msra.mxu0 %v1334
  %1368 = vmatprep.subr.mxu0 0.0
  %1369 = vmatpush1.xpose.msra.mxu0 %v1336
  %1370 = vmatprep.subr.mxu0 0.0
  %1371 = vmatpush1.xpose.msra.mxu0 %v1338
  %1372 = vmatprep.subr.mxu0 0.0
  %1373 = vmatpush1.xpose.msra.mxu0 %v1340
  %1374 = vmatprep.subr.mxu0 0.0
  %1375 = vmatpush1.xpose.msra.mxu0 %v1342
  %1376 = vmatprep.subr.mxu0 0.0
  %1377 = vmatpush1.xpose.msra.mxu0 %v1344
  %1378 = vmatprep.subr.mxu0 0.0
  %1379 = vmatpush1.xpose.msra.mxu0 %v1346
  %1380 = vmatprep.subr.mxu0 0.0
  %1381 = vmatpush1.xpose.msra.mxu0 %v1348
  %1382 = vmatprep.subr.mxu0 0.0
  %1383 = vmatpush1.xpose.msra.mxu0 0.0
  %1384 = vmatprep.subr.mxu0 0.0
  %1385 = vmatpush1.xpose.msra.mxu0 0.0
  %1386 = vmatprep.subr.mxu0 0.0
  %1387 = vmatpush1.xpose.msra.mxu0 0.0
  %1388 = vmatprep.subr.mxu0 0.0
  %1389 = vmatpush1.xpose.msra.mxu0 0.0
  %1390 = vmatprep.subr.mxu0 0.0
  %1391 = vmatpush1.xpose.msra.mxu0 0.0
  %1392 = vmatprep.subr.mxu0 0.0
  %1393 = vmatpush1.xpose.msra.mxu0 0.0
  %1394 = vmatprep.subr.mxu0 0.0
  %1395 = vmatpush1.xpose.msra.mxu0 0.0
  %1396 = vmatprep.subr.mxu0 0.0
  %1397 = vmatpush1.xpose.msra.mxu0 0.0
  %1398 = vmatprep.subr.mxu0 0.0
  %1399 = vmatpush1.xpose.msra.mxu0 0.0
  %1400 = vmatprep.subr.mxu0 0.0
  %1401 = vmatpush1.xpose.msra.mxu0 0.0
  %1402 = vmatprep.subr.mxu0 0.0
  %1403 = vmatpush1.xpose.msra.mxu0 0.0
  %1404 = vmatprep.subr.mxu0 0.0
  %1405 = vmatpush1.xpose.msra.mxu0 0.0
  %1406 = vmatprep.subr.mxu0 0.0
  %1407 = vmatpush1.xpose.msra.mxu0 0.0
  %1408 = vmatprep.subr.mxu0 0.0
  %1409 = vmatpush1.xpose.msra.mxu0 0.0
  %1410 = vmatprep.subr.mxu0 0.0
  %1411 = vmatpush1.xpose.msra.mxu0 0.0
  %1412 = vmatprep.subr.mxu0 0.0
  %1413 = vmatpush1.xpose.msra.mxu0 0.0
  %1414 = vmatprep.mubr.f32.mxu0 0.0
  %1415 = vmatmul.mubr.f32.gmra.mrb[0].mxu0 %v1300
  %v1416 = vpop.f32.mrb[0].mxu0
  %v1417 = vadd.f32 0.0, %v1416
  %v1418 = vpop.f32.mrb[0].mxu0
  %1419 = vmatprep.mubr.f32.mxu0 0.0
  %1420 = vmatmul.mubr.f32.gmra.mrb[0].mxu0 %v1302
  %v1421 = vpop.f32.mrb[0].mxu0
  %v1422 = vadd.f32 0.0, %v1421
  %v1423 = vpop.f32.mrb[0].mxu0
  %1424 = vmatprep.mubr.f32.mxu0 0.0
  %1425 = vmatmul.mubr.f32.gmra.mrb[0].mxu0 %v1304
  %v1426 = vpop.f32.mrb[0].mxu0
  %v1427 = vadd.f32 0.0, %v1426
  %v1428 = vpop.f32.mrb[0].mxu0
  %1429 = vmatprep.mubr.f32.mxu0 0.0
  %1430 = vmatmul.mubr.f32.gmra.mrb[0].mxu0 %v1306
  %v1431 = vpop.f32.mrb[0].mxu0
  %v1432 = vadd.f32 0.0, %v1431
  %v1433 = vpop.f32.mrb[0].mxu0
  %1434 = vmatprep.mubr.f32.mxu0 0.0
  %1435 = vmatmul.mubr.f32.gmra.mrb[0].mxu0 %v1308
  %v1436 = vpop.f32.mrb[0].mxu0
  %v1437 = vadd.f32 0.0, %v1436
  %v1438 = vpop.f32.mrb[0].mxu0
  %1439 = vmatprep.mubr.f32.mxu0 0.0
  %1440 = vmatmul.mubr.f32.gmra.mrb[0].mxu0 %v1310
  %v1441 = vpop.f32.mrb[0].mxu0
  %v1442 = vadd.f32 0.0, %v1441
  %v1443 = vpop.f32.mrb[0].mxu0
  %1444 = vmatprep.mubr.f32.mxu0 0.0
  %1445 = vmatmul.mubr.f32.gmra.mrb[0].mxu0 %v1312
  %v1446 = vpop.f32.mrb[0].mxu0
  %v1447 = vadd.f32 0.0, %v1446
  %v1448 = vpop.f32.mrb[0].mxu0
  %1449 = vmatprep.mubr.f32.mxu0 0.0
  %1450 = vmatmul.mubr.f32.gmra.mrb[0].mxu0 %v1314
  %v1451 = vpop.f32.mrb[0].mxu0
  %v1452 = vadd.f32 0.0, %v1451
  %v1453 = vpop.f32.mrb[0].mxu0
  %1454 = vmatprep.mubr.f32.mxu0 0.0
  %1455 = vmatmul.mubr.f32.gmra.mrb[0].mxu0 %v1316
  %v1456 = vpop.f32.mrb[0].mxu0
  %v1457 = vadd.f32 0.0, %v1456
  %v1458 = vpop.f32.mrb[0].mxu0
  %1459 = vdwg.mxu0
  %v1460 = vlaneseq
  %v1461 = vshrl.u32 %v1460, 7
  %v1462 = vsub.s32 0, %v1461
  %v1463 = vrot.slane %v1236, %v1462
  %v1464 = vadd.f32 %v1076, %v1463
  %v1465 = vadd.f32 %v1079, %v1463
  %v1466 = vadd.f32 %v1082, %v1463
  %v1467 = vadd.f32 %v1085, %v1463
  %v1468 = vadd.f32 %v1088, %v1463
  %v1469 = vadd.f32 %v1091, %v1463
  %v1470 = vadd.f32 %v1094, %v1463
  %v1471 = vadd.f32 %v1097, %v1463
  %v1472 = vadd.f32 %v1100, %v1463
  %v1473 = vmul.f32 %v1417, 2.0
  %v1474 = vmul.f32 %v1422, 2.0
  %v1475 = vmul.f32 %v1427, 2.0
  %v1476 = vmul.f32 %v1432, 2.0
  %v1477 = vmul.f32 %v1437, 2.0
  %v1478 = vmul.f32 %v1442, 2.0
  %v1479 = vmul.f32 %v1447, 2.0
  %v1480 = vmul.f32 %v1452, 2.0
  %v1481 = vmul.f32 %v1457, 2.0
  %v1482 = vsub.f32 %v1464, %v1473
  %v1483 = vsub.f32 %v1465, %v1474
  %v1484 = vsub.f32 %v1466, %v1475
  %v1485 = vsub.f32 %v1467, %v1476
  %v1486 = vsub.f32 %v1468, %v1477
  %v1487 = vsub.f32 %v1469, %v1478
  %v1488 = vsub.f32 %v1470, %v1479
  %v1489 = vsub.f32 %v1471, %v1480
  %v1490 = vsub.f32 %v1472, %v1481
  %v1491 = vmax.f32 %v1482, 0.0
  %v1492 = vmax.f32 %v1483, 0.0
  %v1493 = vmax.f32 %v1484, 0.0
  %v1494 = vmax.f32 %v1485, 0.0
  %v1495 = vmax.f32 %v1486, 0.0
  %v1496 = vmax.f32 %v1487, 0.0
  %v1497 = vmax.f32 %v1488, 0.0
  %v1498 = vmax.f32 %v1489, 0.0
  %v1499 = vmax.f32 %v1490, 0.0
  %v1500 = vrsqrt.pop %v1491
  %v1501 = vmul.f32 %v1491, %v1500
  %vm1502 = vcmp.eq.f32.partialorder %v1491, inf
  %v1503 = vsel %vm1502, %v1491, %v1501
  %vm1504 = vcmp.eq.f32.partialorder %v1491, 0.0
  %v1505 = vand.u32 %v1491, 2147483648
  %v1506 = vsel %vm1504, %v1505, %v1503
  %v1507 = vrsqrt.pop %v1492
  %v1508 = vmul.f32 %v1492, %v1507
  %vm1509 = vcmp.eq.f32.partialorder %v1492, inf
  %v1510 = vsel %vm1509, %v1492, %v1508
  %vm1511 = vcmp.eq.f32.partialorder %v1492, 0.0
  %v1512 = vand.u32 %v1492, 2147483648
  %v1513 = vsel %vm1511, %v1512, %v1510
  %v1514 = vrsqrt.pop %v1493
  %v1515 = vmul.f32 %v1493, %v1514
  %vm1516 = vcmp.eq.f32.partialorder %v1493, inf
  %v1517 = vsel %vm1516, %v1493, %v1515
  %vm1518 = vcmp.eq.f32.partialorder %v1493, 0.0
  %v1519 = vand.u32 %v1493, 2147483648
  %v1520 = vsel %vm1518, %v1519, %v1517
  %v1521 = vrsqrt.pop %v1494
  %v1522 = vmul.f32 %v1494, %v1521
  %vm1523 = vcmp.eq.f32.partialorder %v1494, inf
  %v1524 = vsel %vm1523, %v1494, %v1522
  %vm1525 = vcmp.eq.f32.partialorder %v1494, 0.0
  %v1526 = vand.u32 %v1494, 2147483648
  %v1527 = vsel %vm1525, %v1526, %v1524
  %v1528 = vrsqrt.pop %v1495
  %v1529 = vmul.f32 %v1495, %v1528
  %vm1530 = vcmp.eq.f32.partialorder %v1495, inf
  %v1531 = vsel %vm1530, %v1495, %v1529
  %vm1532 = vcmp.eq.f32.partialorder %v1495, 0.0
  %v1533 = vand.u32 %v1495, 2147483648
  %v1534 = vsel %vm1532, %v1533, %v1531
  %v1535 = vrsqrt.pop %v1496
  %v1536 = vmul.f32 %v1496, %v1535
  %vm1537 = vcmp.eq.f32.partialorder %v1496, inf
  %v1538 = vsel %vm1537, %v1496, %v1536
  %vm1539 = vcmp.eq.f32.partialorder %v1496, 0.0
  %v1540 = vand.u32 %v1496, 2147483648
  %v1541 = vsel %vm1539, %v1540, %v1538
  %v1542 = vrsqrt.pop %v1497
  %v1543 = vmul.f32 %v1497, %v1542
  %vm1544 = vcmp.eq.f32.partialorder %v1497, inf
  %v1545 = vsel %vm1544, %v1497, %v1543
  %vm1546 = vcmp.eq.f32.partialorder %v1497, 0.0
  %v1547 = vand.u32 %v1497, 2147483648
  %v1548 = vsel %vm1546, %v1547, %v1545
  %v1549 = vrsqrt.pop %v1498
  %v1550 = vmul.f32 %v1498, %v1549
  %vm1551 = vcmp.eq.f32.partialorder %v1498, inf
  %v1552 = vsel %vm1551, %v1498, %v1550
  %vm1553 = vcmp.eq.f32.partialorder %v1498, 0.0
  %v1554 = vand.u32 %v1498, 2147483648
  %v1555 = vsel %vm1553, %v1554, %v1552
  %v1556 = vrsqrt.pop %v1499
  %v1557 = vmul.f32 %v1499, %v1556
  %vm1558 = vcmp.eq.f32.partialorder %v1499, inf
  %v1559 = vsel %vm1558, %v1499, %v1557
  %vm1560 = vcmp.eq.f32.partialorder %v1499, 0.0
  %v1561 = vand.u32 %v1499, 2147483648
  %v1562 = vsel %vm1560, %v1561, %v1559
  %s1563 = scalar_lea.vmem %s2, 72
  %1564 = vst [vmem:[%s1563] sm:$0xff] %v1506
  %1565 = vst [vmem:[%s1563 + $0x8] sm:$0xff] %v1513
  %1566 = vst [vmem:[%s1563 + $0x10] sm:$0xff] %v1520
  %1567 = vst [vmem:[%s1563 + $0x18] sm:$0xff] %v1527
  %1568 = vst [vmem:[%s1563 + $0x20] sm:$0xff] %v1534
  %1569 = vst [vmem:[%s1563 + $0x28] sm:$0xff] %v1541
  %1570 = vst [vmem:[%s1563 + $0x30] sm:$0xff] %v1548
  %1571 = vst [vmem:[%s1563 + $0x38] sm:$0xff] %v1555
  %1572 = vst [vmem:[%s1563 + $0x40] sm:$0x1] %v1562
  // Predicated region
  $region10: #{cepdist_forward.1} parent=0 // pred_check
    _
  $region11: #{cepdist_forward.1} parent=0 // pred_check_branch
    %1574 = sbr.rel (0) target = $region13
  $region12: #{cepdist_forward.1} parent=0 // pred_region
    _
  $region13: #{cepdist_forward.1} parent=0 // pred_fallthru
    _
  // Predicated region
  $region14: #{cepdist_forward.1} parent=0 // pred_check
    _
  $region15: #{cepdist_forward.1} parent=0 // pred_check_branch
    %1576 = sbr.rel (0) target = $region17
  $region16: #{cepdist_forward.1} parent=0 // pred_region
    _
  $region17: #{cepdist_forward.1} parent=0 // pred_fallthru
    _

</llo_original>
